<compile_context>
chip_gen: v6e
topology: v6e:2x2x1
jax: 0.10.0
libtpu: 0.0.40
codegen_flags: <defaults>
</compile_context>

<pallas_src>
import math
from functools import partial

import jax
import jax.numpy as jnp
from jax import lax
from jax.experimental import pallas as pl
from jax.experimental.pallas import tpu as pltpu


def _mha_kernel(q_ref, k_ref, v_ref,
                wqkv_ref, bqkv_ref, wo_ref, bo_ref,
                o_ref,
                kproj_ref, vproj_ref, concat_ref,
                *, num_heads, d_k, d_model):
    qi = pl.program_id(1)

    # Project K and V once per batch element (first query tile) into persistent
    # VMEM scratch; subsequent query tiles reuse them.
    @pl.when(qi == 0)
    def _project_kv():
        xk = k_ref[0]                                   # (S, D) compute dtype
        xv = v_ref[0]
        kproj_ref[...] = (
            jnp.dot(xk, wqkv_ref[1], preferred_element_type=jnp.float32)
            + bqkv_ref[1]).astype(kproj_ref.dtype)
        vproj_ref[...] = (
            jnp.dot(xv, wqkv_ref[2], preferred_element_type=jnp.float32)
            + bqkv_ref[2]).astype(vproj_ref.dtype)

    # Query projection for this tile (f32 accumulate).  The 1/sqrt(d_k) scale
    # is already folded into wqkv_ref[0] / bqkv_ref[0] by the wrapper.  Cast
    # to the compute dtype ONCE here (not per head).
    xq = q_ref[0]                                       # (TQ, D)
    q_proj = (jnp.dot(xq, wqkv_ref[0], preferred_element_type=jnp.float32)
              + bqkv_ref[0]).astype(kproj_ref.dtype)    # (TQ, D)

    k_proj = kproj_ref[...]                             # (S, D) compute dtype
    v_proj = vproj_ref[...]                             # (S, D)

    # TODO(synk): optional attention mask (masked_fill) is not wired in; the
    # reference forward is exercised with mask=None.
    for h in range(num_heads):
        lo = h * d_k
        qh = q_proj[:, lo:lo + d_k]                     # (TQ, d_k)
        kh = k_proj[:, lo:lo + d_k]                     # (S, d_k)
        vh = v_proj[:, lo:lo + d_k]                     # (S, d_k)

        # (TQ, S) scores via dot_general contracting (1,1): no kh.T relayout.
        scores = lax.dot_general(qh, kh, (((1,), (1,)), ((), ())),
                                 preferred_element_type=jnp.float32)
        scores = scores - jnp.max(scores, axis=-1, keepdims=True)
        e = jnp.exp(scores)                             # (TQ, S) f32

        # Un-normalized PV matmul, then normalize on the small (TQ, d_k)
        # output (softmax normalization is linear w.r.t. V) — ~S/d_k fewer
        # per-element multiplies than scaling the (TQ, S) probabilities.
        pv = jnp.dot(e.astype(vh.dtype), vh,
                     preferred_element_type=jnp.float32)           # (TQ, d_k)
        inv = pl.reciprocal(jnp.sum(e, axis=-1, keepdims=True), approx=True)
        concat_ref[:, lo:lo + d_k] = (pv * inv).astype(concat_ref.dtype)

    # Single fused output projection over the full model dim: one
    # (TQ, D) x (D, D) MXU matmul instead of H partial folds.
    o_ref[0] = (jnp.dot(concat_ref[...], wo_ref[...],
                        preferred_element_type=jnp.float32)
                + bo_ref[...]).astype(o_ref.dtype)


def _pick_q_tile(S, scores_budget_bytes=4 << 20):
    """Largest tile in {512,256,128} dividing S whose f32 (TQ,S) scores
    temporary fits the budget; falls back to the largest divisor, then S."""
    for t in (512, 256, 128):
        if S % t == 0 and t * S * 4 <= scores_budget_bytes:
            return t
    for t in (512, 256, 128):
        if S % t == 0:
            return t
    return S


def multi_head_attention(query, key, value, params, *, num_heads,
                         compute_dtype=None):
    B, S, D = query.shape
    assert D % num_heads == 0
    d_k = D // num_heads
    wq, bq, wk, bk, wv, bv, wo, bo = params

    cdt = compute_dtype if compute_dtype is not None else query.dtype
    scale = 1.0 / math.sqrt(d_k)

    # Pre-transpose to y = x @ W layout; stack Q/K/V weights & biases so the
    # kernel sees one weight operand and one bias operand for the projections.
    # The softmax scale is folded into the Q projection (weight AND bias).
    w_qkv = jnp.stack([wq.T * scale, wk.T, wv.T]).astype(cdt)      # (3, D, D)
    b_qkv = jnp.stack([bq * scale, bk, bv]).reshape(3, 1, D).astype(jnp.float32)
    wo_t = wo.T.astype(cdt)                                        # (D, D)
    bo2 = bo.reshape(1, D).astype(jnp.float32)

    q_in = query.astype(cdt)
    k_in = key.astype(cdt)
    v_in = value.astype(cdt)

    TQ = _pick_q_tile(S)
    n_qt = S // TQ

    single = pl.Buffered(1)   # grid-invariant operands: no double-buffering.

    q_spec = pl.BlockSpec((1, TQ, D), lambda b, qi: (b, qi, 0))
    kv_spec = pl.BlockSpec((1, S, D), lambda b, qi: (b, 0, 0),
                           pipeline_mode=single)
    wqkv_spec = pl.BlockSpec((3, D, D), lambda b, qi: (0, 0, 0),
                             pipeline_mode=single)
    bqkv_spec = pl.BlockSpec((3, 1, D), lambda b, qi: (0, 0, 0),
                             pipeline_mode=single)
    wo_spec = pl.BlockSpec((D, D), lambda b, qi: (0, 0), pipeline_mode=single)
    bo_spec = pl.BlockSpec((1, D), lambda b, qi: (0, 0), pipeline_mode=single)
    out_spec = pl.BlockSpec((1, TQ, D), lambda b, qi: (b, qi, 0))

    kernel = partial(_mha_kernel, num_heads=num_heads, d_k=d_k, d_model=D)

    itemsize_c = jnp.dtype(cdt).itemsize
    out_itemsize = jnp.dtype(query.dtype).itemsize

    # Explicit VMEM budget derived from the actual footprint (inputs x buffer
    # count + scratch + f32 temporaries headroom), clamped to sane bounds.
    vmem_bytes = (
        2 * TQ * D * itemsize_c                 # q input (double-buffered)
        + 2 * S * D * itemsize_c                # k, v inputs (single-buffered)
        + 2 * TQ * D * out_itemsize             # output (double-buffered)
        + 4 * D * D * itemsize_c + 4 * D * 4    # weights + biases (single)
        + 2 * S * D * itemsize_c                # K/V projection scratch
        + TQ * D * itemsize_c                   # concat scratch
        + 3 * TQ * S * 4                        # f32 scores/exp temporaries
        + 4 * TQ * D * 4                        # misc f32 temporaries
    )
    vmem_limit = min(128 << 20, max(32 << 20, int(vmem_bytes * 1.25)))

    # Advisory cost estimate so XLA can schedule around the kernel
    # (projection + attention flops, exp count, HBM reads + output write).
    flops = 8 * B * S * D * D + 4 * B * S * S * D
    transcendentals = B * num_heads * S * S
    bytes_accessed = (3 * B * S * D * itemsize_c       # q, k, v reads
                      + B * S * D * out_itemsize       # output write
                      + 4 * D * D * itemsize_c + 4 * D * 4)  # weights + biases

    return pl.pallas_call(
        kernel,
        out_shape=jax.ShapeDtypeStruct((B, S, D), query.dtype),
        grid_spec=pltpu.PrefetchScalarGridSpec(
            num_scalar_prefetch=0,
            grid=(B, n_qt),
            in_specs=[q_spec, kv_spec, kv_spec,
                      wqkv_spec, bqkv_spec, wo_spec, bo_spec],
            out_specs=out_spec,
            scratch_shapes=[pltpu.VMEM((S, D), cdt),    # K projection cache
                            pltpu.VMEM((S, D), cdt),    # V projection cache
                            pltpu.VMEM((TQ, D), cdt)],  # head-concat scratch
        ),
        compiler_params=pltpu.CompilerParams(
            # Batch axis can be sharded across TensorCores; the query-tile axis
            # is 'arbitrary' because the K/V scratch carries across it.
            dimension_semantics=("parallel", "arbitrary"),
            vmem_limit_bytes=vmem_limit),
        cost_estimate=pl.CostEstimate(flops=flops,
                                      transcendentals=transcendentals,
                                      bytes_accessed=bytes_accessed),
    )(q_in, k_in, v_in, w_qkv, b_qkv, wo_t, bo2)


def _reference(query, key, value, params, *, num_heads):
    """Pure-JAX reference matching the PyTorch forward (mask=None)."""
    B, S, D = query.shape
    d_k = D // num_heads
    wq, bq, wk, bk, wv, bv, wo, bo = params

    def lin(x, w, b):
        return x @ w.T + b

    Q = lin(query, wq, bq).reshape(B, S, num_heads, d_k).transpose(0, 2, 1, 3)
    K = lin(key, wk, bk).reshape(B, S, num_heads, d_k).transpose(0, 2, 1, 3)
    V = lin(value, wv, bv).reshape(B, S, num_heads, d_k).transpose(0, 2, 1, 3)

    scores = jnp.einsum('bhqd,bhkd->bhqk', Q, K) / math.sqrt(d_k)
    attn = jax.nn.softmax(scores, axis=-1)
    x = jnp.einsum('bhqk,bhkd->bhqd', attn, V)
    x = x.transpose(0, 2, 1, 3).reshape(B, S, D)
    return lin(x, wo, bo)


if __name__ == "__main__":
    B, S, D, H = 2, 8, 32, 4

    key0 = jax.random.PRNGKey(0)
    keys = jax.random.split(key0, 12)

    # Deterministic parameter init (nn.Linear-style uniform bounds).
    bound = 1.0 / math.sqrt(D)

    def u(k, shape):
        return jax.random.uniform(k, shape, jnp.float32, -bound, bound)

    params = (
        u(keys[0], (D, D)), u(keys[1], (D,)),   # W_q
        u(keys[2], (D, D)), u(keys[3], (D,)),   # W_k
        u(keys[4], (D, D)), u(keys[5], (D,)),   # W_v
        u(keys[6], (D, D)), u(keys[7], (D,)),   # fc_out
    )

    query = jax.random.normal(keys[8], (B, S, D), jnp.float32)
    key_in = jax.random.normal(keys[9], (B, S, D), jnp.float32)
    value = jax.random.normal(keys[10], (B, S, D), jnp.float32)

    out = multi_head_attention(query, key_in, value, params, num_heads=H)
    out = jax.block_until_ready(out)

    ref = _reference(query, key_in, value, params, num_heads=H)
    assert out.shape == (B, S, D)
    # Tolerance loosened slightly vs pure-f32 to cover the EUP approximate
    # reciprocal in the softmax normalization.
    max_err = float(jnp.max(jnp.abs(out - ref)))
    assert jnp.allclose(out, ref, atol=2e-3, rtol=2e-3), \
        f"mismatch vs reference (max abs err {max_err})"

    print("KERNEL_OK")
</pallas_src>

<mosaic_0001>
module attributes {stable_mosaic.version = 11 : i64} {
  func.func @_mha_kernel(%arg0: i32, %arg1: i32, %arg2: memref<1x8x32xf32, #tpu.memory_space<vmem>>, %arg3: memref<1x8x32xf32, #tpu.memory_space<vmem>>, %arg4: memref<1x8x32xf32, #tpu.memory_space<vmem>>, %arg5: memref<3x32x32xf32, #tpu.memory_space<vmem>>, %arg6: memref<3x1x32xf32, #tpu.memory_space<vmem>>, %arg7: memref<32x32xf32, #tpu.memory_space<vmem>>, %arg8: memref<1x32xf32, #tpu.memory_space<vmem>>, %arg9: memref<1x8x32xf32, #tpu.memory_space<vmem>>, %arg10: memref<8x32xf32, #tpu.memory_space<vmem>>, %arg11: memref<8x32xf32, #tpu.memory_space<vmem>>, %arg12: memref<8x32xf32, #tpu.memory_space<vmem>>) attributes {dimension_semantics = [#tpu.dimension_semantics<parallel>, #tpu.dimension_semantics<arbitrary>], iteration_bounds = array<i64: 2, 1>, scalar_prefetch = 0 : i64, scratch_operands = 3 : i64, tpu.core_type = #tpu.core_type<tc>, window_params = [{transform_indices = @transform_0, window_bounds = array<i64: 1, 8, 32>}, {pipeline_mode = #tpu.pipeline_mode<synchronous>, transform_indices = @transform_1, window_bounds = array<i64: 1, 8, 32>}, {pipeline_mode = #tpu.pipeline_mode<synchronous>, transform_indices = @transform_2, window_bounds = array<i64: 1, 8, 32>}, {pipeline_mode = #tpu.pipeline_mode<synchronous>, transform_indices = @transform_3, window_bounds = array<i64: 3, 32, 32>}, {pipeline_mode = #tpu.pipeline_mode<synchronous>, transform_indices = @transform_4, window_bounds = array<i64: 3, 1, 32>}, {pipeline_mode = #tpu.pipeline_mode<synchronous>, transform_indices = @transform_5, window_bounds = array<i64: 32, 32>}, {pipeline_mode = #tpu.pipeline_mode<synchronous>, transform_indices = @transform_6, window_bounds = array<i64: 1, 32>}, {transform_indices = @transform_7, window_bounds = array<i64: 1, 8, 32>}]} {
    %c0_i32 = arith.constant 0 : i32
    %0 = arith.cmpi eq, %arg1, %c0_i32 : i32
    %1 = arith.extui %0 : i1 to i32
    %c0_i32_0 = arith.constant 0 : i32
    %2 = arith.cmpi ne, %1, %c0_i32_0 : i32
    scf.if %2 {
      %c0_44 = arith.constant 0 : index
      %c0_45 = arith.constant 0 : index
      %c0_46 = arith.constant 0 : index
      %87 = vector.load %arg3[%c0_44, %c0_45, %c0_46] : memref<1x8x32xf32, #tpu.memory_space<vmem>>, vector<1x8x32xf32>
      %88 = vector.shape_cast %87 : vector<1x8x32xf32> to vector<8x32xf32>
      %c0_47 = arith.constant 0 : index
      %c0_48 = arith.constant 0 : index
      %c0_49 = arith.constant 0 : index
      %89 = vector.load %arg4[%c0_47, %c0_48, %c0_49] : memref<1x8x32xf32, #tpu.memory_space<vmem>>, vector<1x8x32xf32>
      %90 = vector.shape_cast %89 : vector<1x8x32xf32> to vector<8x32xf32>
      %c1 = arith.constant 1 : index
      %c0_50 = arith.constant 0 : index
      %c0_51 = arith.constant 0 : index
      %91 = vector.load %arg5[%c1, %c0_50, %c0_51] : memref<3x32x32xf32, #tpu.memory_space<vmem>>, vector<1x32x32xf32>
      %92 = vector.shape_cast %91 : vector<1x32x32xf32> to vector<32x32xf32>
      %cst_52 = arith.constant dense<0.000000e+00> : vector<8x32xf32>
      %93 = tpu.matmul %88, %92, %cst_52 {dimension_numbers = #tpu.dot_dimension_numbers<[1], [0], [0], [1], [0, 0, 1, 1], [], []>} : vector<8x32xf32>, vector<32x32xf32>, vector<8x32xf32> -> vector<8x32xf32>
      %c1_53 = arith.constant 1 : index
      %c0_54 = arith.constant 0 : index
      %c0_55 = arith.constant 0 : index
      %94 = vector.load %arg6[%c1_53, %c0_54, %c0_55] : memref<3x1x32xf32, #tpu.memory_space<vmem>>, vector<1x1x32xf32>
      %95 = vector.shape_cast %94 : vector<1x1x32xf32> to vector<1x32xf32>
      %96 = vector.broadcast %95 : vector<1x32xf32> to vector<8x32xf32>
      %97 = arith.addf %93, %96 : vector<8x32xf32>
      %c0_56 = arith.constant 0 : index
      %c0_57 = arith.constant 0 : index
      %98 = vector.load %arg10[%c0_56, %c0_57] : memref<8x32xf32, #tpu.memory_space<vmem>>, vector<8x32xf32>
      tpu.vector_store %arg10[%c0_56, %c0_57], %97 {strides = array<i32>} : memref<8x32xf32, #tpu.memory_space<vmem>>, vector<8x32xf32>,
      %c2 = arith.constant 2 : index
      %c0_58 = arith.constant 0 : index
      %c0_59 = arith.constant 0 : index
      %99 = vector.load %arg5[%c2, %c0_58, %c0_59] : memref<3x32x32xf32, #tpu.memory_space<vmem>>, vector<1x32x32xf32>
      %100 = vector.shape_cast %99 : vector<1x32x32xf32> to vector<32x32xf32>
      %cst_60 = arith.constant dense<0.000000e+00> : vector<8x32xf32>
      %101 = tpu.matmul %90, %100, %cst_60 {dimension_numbers = #tpu.dot_dimension_numbers<[1], [0], [0], [1], [0, 0, 1, 1], [], []>} : vector<8x32xf32>, vector<32x32xf32>, vector<8x32xf32> -> vector<8x32xf32>
      %c2_61 = arith.constant 2 : index
      %c0_62 = arith.constant 0 : index
      %c0_63 = arith.constant 0 : index
      %102 = vector.load %arg6[%c2_61, %c0_62, %c0_63] : memref<3x1x32xf32, #tpu.memory_space<vmem>>, vector<1x1x32xf32>
      %103 = vector.shape_cast %102 : vector<1x1x32xf32> to vector<1x32xf32>
      %104 = vector.broadcast %103 : vector<1x32xf32> to vector<8x32xf32>
      %105 = arith.addf %101, %104 : vector<8x32xf32>
      %c0_64 = arith.constant 0 : index
      %c0_65 = arith.constant 0 : index
      %106 = vector.load %arg11[%c0_64, %c0_65] : memref<8x32xf32, #tpu.memory_space<vmem>>, vector<8x32xf32>
      tpu.vector_store %arg11[%c0_64, %c0_65], %105 {strides = array<i32>} : memref<8x32xf32, #tpu.memory_space<vmem>>, vector<8x32xf32>,
    } else {
    }
    %c0 = arith.constant 0 : index
    %c0_1 = arith.constant 0 : index
    %c0_2 = arith.constant 0 : index
    %3 = vector.load %arg2[%c0, %c0_1, %c0_2] : memref<1x8x32xf32, #tpu.memory_space<vmem>>, vector<1x8x32xf32>
    %4 = vector.shape_cast %3 : vector<1x8x32xf32> to vector<8x32xf32>
    %c0_3 = arith.constant 0 : index
    %c0_4 = arith.constant 0 : index
    %c0_5 = arith.constant 0 : index
    %5 = vector.load %arg5[%c0_3, %c0_4, %c0_5] : memref<3x32x32xf32, #tpu.memory_space<vmem>>, vector<1x32x32xf32>
    %6 = vector.shape_cast %5 : vector<1x32x32xf32> to vector<32x32xf32>
    %cst = arith.constant dense<0.000000e+00> : vector<8x32xf32>
    %7 = tpu.matmul %4, %6, %cst {dimension_numbers = #tpu.dot_dimension_numbers<[1], [0], [0], [1], [0, 0, 1, 1], [], []>} : vector<8x32xf32>, vector<32x32xf32>, vector<8x32xf32> -> vector<8x32xf32>
    %c0_6 = arith.constant 0 : index
    %c0_7 = arith.constant 0 : index
    %c0_8 = arith.constant 0 : index
    %8 = vector.load %arg6[%c0_6, %c0_7, %c0_8] : memref<3x1x32xf32, #tpu.memory_space<vmem>>, vector<1x1x32xf32>
    %9 = vector.shape_cast %8 : vector<1x1x32xf32> to vector<1x32xf32>
    %10 = vector.broadcast %9 : vector<1x32xf32> to vector<8x32xf32>
    %11 = arith.addf %7, %10 : vector<8x32xf32>
    %c0_9 = arith.constant 0 : index
    %c0_10 = arith.constant 0 : index
    %12 = vector.load %arg10[%c0_9, %c0_10] : memref<8x32xf32, #tpu.memory_space<vmem>>, vector<8x32xf32>
    %c0_11 = arith.constant 0 : index
    %c0_12 = arith.constant 0 : index
    %13 = vector.load %arg11[%c0_11, %c0_12] : memref<8x32xf32, #tpu.memory_space<vmem>>, vector<8x32xf32>
    %14 = vector.extract_strided_slice %11 {offsets = [0, 0], sizes = [8, 8], strides = [1, 1]} : vector<8x32xf32> to vector<8x8xf32>
    %15 = vector.extract_strided_slice %12 {offsets = [0, 0], sizes = [8, 8], strides = [1, 1]} : vector<8x32xf32> to vector<8x8xf32>
    %16 = vector.extract_strided_slice %13 {offsets = [0, 0], sizes = [8, 8], strides = [1, 1]} : vector<8x32xf32> to vector<8x8xf32>
    %cst_13 = arith.constant dense<0.000000e+00> : vector<8x8xf32>
    %17 = tpu.matmul %14, %15, %cst_13 {dimension_numbers = #tpu.dot_dimension_numbers<[1], [1], [0], [0], [0, 0, 1, 0], [], []>} : vector<8x8xf32>, vector<8x8xf32>, vector<8x8xf32> -> vector<8x8xf32>
    %cst_14 = arith.constant dense<0xFF800000> : vector<8xf32>
    %18 = vector.multi_reduction <maximumf>, %17, %cst_14 [1] : vector<8x8xf32> to vector<8xf32>
    %19 = vector.shape_cast %18 : vector<8xf32> to vector<8x1xf32>
    %20 = vector.broadcast %19 : vector<8x1xf32> to vector<8x8xf32>
    %21 = arith.subf %17, %20 : vector<8x8xf32>
    %22 = math.exp %21 : vector<8x8xf32>
    %cst_15 = arith.constant dense<0.000000e+00> : vector<8x8xf32>
    %23 = tpu.matmul %22, %16, %cst_15 {dimension_numbers = #tpu.dot_dimension_numbers<[1], [0], [0], [1], [0, 0, 1, 1], [], []>} : vector<8x8xf32>, vector<8x8xf32>, vector<8x8xf32> -> vector<8x8xf32>
    %cst_16 = arith.constant dense<0.000000e+00> : vector<8xf32>
    %24 = vector.multi_reduction <add>, %22, %cst_16 [1] : vector<8x8xf32> to vector<8xf32>
    %25 = vector.shape_cast %24 : vector<8xf32> to vector<8x1xf32>
    %26 = tpu.reciprocal %25 {approx = true} : vector<8x1xf32> -> vector<8x1xf32>
    %27 = vector.broadcast %26 : vector<8x1xf32> to vector<8x8xf32>
    %28 = arith.mulf %23, %27 : vector<8x8xf32>
    %c0_17 = arith.constant 0 : index
    %c0_18 = arith.constant 0 : index
    %29 = vector.load %arg12[%c0_17, %c0_18] : memref<8x32xf32, #tpu.memory_space<vmem>>, vector<8x8xf32>
    tpu.vector_store %arg12[%c0_17, %c0_18], %28 {strides = array<i32>} : memref<8x32xf32, #tpu.memory_space<vmem>>, vector<8x8xf32>,
    %30 = vector.extract_strided_slice %11 {offsets = [0, 8], sizes = [8, 8], strides = [1, 1]} : vector<8x32xf32> to vector<8x8xf32>
    %31 = vector.extract_strided_slice %12 {offsets = [0, 8], sizes = [8, 8], strides = [1, 1]} : vector<8x32xf32> to vector<8x8xf32>
    %32 = vector.extract_strided_slice %13 {offsets = [0, 8], sizes = [8, 8], strides = [1, 1]} : vector<8x32xf32> to vector<8x8xf32>
    %cst_19 = arith.constant dense<0.000000e+00> : vector<8x8xf32>
    %33 = tpu.matmul %30, %31, %cst_19 {dimension_numbers = #tpu.dot_dimension_numbers<[1], [1], [0], [0], [0, 0, 1, 0], [], []>} : vector<8x8xf32>, vector<8x8xf32>, vector<8x8xf32> -> vector<8x8xf32>
    %cst_20 = arith.constant dense<0xFF800000> : vector<8xf32>
    %34 = vector.multi_reduction <maximumf>, %33, %cst_20 [1] : vector<8x8xf32> to vector<8xf32>
    %35 = vector.shape_cast %34 : vector<8xf32> to vector<8x1xf32>
    %36 = vector.broadcast %35 : vector<8x1xf32> to vector<8x8xf32>
    %37 = arith.subf %33, %36 : vector<8x8xf32>
    %38 = math.exp %37 : vector<8x8xf32>
    %cst_21 = arith.constant dense<0.000000e+00> : vector<8x8xf32>
    %39 = tpu.matmul %38, %32, %cst_21 {dimension_numbers = #tpu.dot_dimension_numbers<[1], [0], [0], [1], [0, 0, 1, 1], [], []>} : vector<8x8xf32>, vector<8x8xf32>, vector<8x8xf32> -> vector<8x8xf32>
    %cst_22 = arith.constant dense<0.000000e+00> : vector<8xf32>
    %40 = vector.multi_reduction <add>, %38, %cst_22 [1] : vector<8x8xf32> to vector<8xf32>
    %41 = vector.shape_cast %40 : vector<8xf32> to vector<8x1xf32>
    %42 = tpu.reciprocal %41 {approx = true} : vector<8x1xf32> -> vector<8x1xf32>
    %43 = vector.broadcast %42 : vector<8x1xf32> to vector<8x8xf32>
    %44 = arith.mulf %39, %43 : vector<8x8xf32>
    %c0_23 = arith.constant 0 : index
    %c8 = arith.constant 8 : index
    %45 = vector.load %arg12[%c0_23, %c8] : memref<8x32xf32, #tpu.memory_space<vmem>>, vector<8x8xf32>
    tpu.vector_store %arg12[%c0_23, %c8], %44 {strides = array<i32>} : memref<8x32xf32, #tpu.memory_space<vmem>>, vector<8x8xf32>,
    %46 = vector.extract_strided_slice %11 {offsets = [0, 16], sizes = [8, 8], strides = [1, 1]} : vector<8x32xf32> to vector<8x8xf32>
    %47 = vector.extract_strided_slice %12 {offsets = [0, 16], sizes = [8, 8], strides = [1, 1]} : vector<8x32xf32> to vector<8x8xf32>
    %48 = vector.extract_strided_slice %13 {offsets = [0, 16], sizes = [8, 8], strides = [1, 1]} : vector<8x32xf32> to vector<8x8xf32>
    %cst_24 = arith.constant dense<0.000000e+00> : vector<8x8xf32>
    %49 = tpu.matmul %46, %47, %cst_24 {dimension_numbers = #tpu.dot_dimension_numbers<[1], [1], [0], [0], [0, 0, 1, 0], [], []>} : vector<8x8xf32>, vector<8x8xf32>, vector<8x8xf32> -> vector<8x8xf32>
    %cst_25 = arith.constant dense<0xFF800000> : vector<8xf32>
    %50 = vector.multi_reduction <maximumf>, %49, %cst_25 [1] : vector<8x8xf32> to vector<8xf32>
    %51 = vector.shape_cast %50 : vector<8xf32> to vector<8x1xf32>
    %52 = vector.broadcast %51 : vector<8x1xf32> to vector<8x8xf32>
    %53 = arith.subf %49, %52 : vector<8x8xf32>
    %54 = math.exp %53 : vector<8x8xf32>
    %cst_26 = arith.constant dense<0.000000e+00> : vector<8x8xf32>
    %55 = tpu.matmul %54, %48, %cst_26 {dimension_numbers = #tpu.dot_dimension_numbers<[1], [0], [0], [1], [0, 0, 1, 1], [], []>} : vector<8x8xf32>, vector<8x8xf32>, vector<8x8xf32> -> vector<8x8xf32>
    %cst_27 = arith.constant dense<0.000000e+00> : vector<8xf32>
    %56 = vector.multi_reduction <add>, %54, %cst_27 [1] : vector<8x8xf32> to vector<8xf32>
    %57 = vector.shape_cast %56 : vector<8xf32> to vector<8x1xf32>
    %58 = tpu.reciprocal %57 {approx = true} : vector<8x1xf32> -> vector<8x1xf32>
    %59 = vector.broadcast %58 : vector<8x1xf32> to vector<8x8xf32>
    %60 = arith.mulf %55, %59 : vector<8x8xf32>
    %c0_28 = arith.constant 0 : index
    %c16 = arith.constant 16 : index
    %61 = vector.load %arg12[%c0_28, %c16] : memref<8x32xf32, #tpu.memory_space<vmem>>, vector<8x8xf32>
    tpu.vector_store %arg12[%c0_28, %c16], %60 {strides = array<i32>} : memref<8x32xf32, #tpu.memory_space<vmem>>, vector<8x8xf32>,
    %62 = vector.extract_strided_slice %11 {offsets = [0, 24], sizes = [8, 8], strides = [1, 1]} : vector<8x32xf32> to vector<8x8xf32>
    %63 = vector.extract_strided_slice %12 {offsets = [0, 24], sizes = [8, 8], strides = [1, 1]} : vector<8x32xf32> to vector<8x8xf32>
    %64 = vector.extract_strided_slice %13 {offsets = [0, 24], sizes = [8, 8], strides = [1, 1]} : vector<8x32xf32> to vector<8x8xf32>
    %cst_29 = arith.constant dense<0.000000e+00> : vector<8x8xf32>
    %65 = tpu.matmul %62, %63, %cst_29 {dimension_numbers = #tpu.dot_dimension_numbers<[1], [1], [0], [0], [0, 0, 1, 0], [], []>} : vector<8x8xf32>, vector<8x8xf32>, vector<8x8xf32> -> vector<8x8xf32>
    %cst_30 = arith.constant dense<0xFF800000> : vector<8xf32>
    %66 = vector.multi_reduction <maximumf>, %65, %cst_30 [1] : vector<8x8xf32> to vector<8xf32>
    %67 = vector.shape_cast %66 : vector<8xf32> to vector<8x1xf32>
    %68 = vector.broadcast %67 : vector<8x1xf32> to vector<8x8xf32>
    %69 = arith.subf %65, %68 : vector<8x8xf32>
    %70 = math.exp %69 : vector<8x8xf32>
    %cst_31 = arith.constant dense<0.000000e+00> : vector<8x8xf32>
    %71 = tpu.matmul %70, %64, %cst_31 {dimension_numbers = #tpu.dot_dimension_numbers<[1], [0], [0], [1], [0, 0, 1, 1], [], []>} : vector<8x8xf32>, vector<8x8xf32>, vector<8x8xf32> -> vector<8x8xf32>
    %cst_32 = arith.constant dense<0.000000e+00> : vector<8xf32>
    %72 = vector.multi_reduction <add>, %70, %cst_32 [1] : vector<8x8xf32> to vector<8xf32>
    %73 = vector.shape_cast %72 : vector<8xf32> to vector<8x1xf32>
    %74 = tpu.reciprocal %73 {approx = true} : vector<8x1xf32> -> vector<8x1xf32>
    %75 = vector.broadcast %74 : vector<8x1xf32> to vector<8x8xf32>
    %76 = arith.mulf %71, %75 : vector<8x8xf32>
    %c0_33 = arith.constant 0 : index
    %c24 = arith.constant 24 : index
    %77 = vector.load %arg12[%c0_33, %c24] : memref<8x32xf32, #tpu.memory_space<vmem>>, vector<8x8xf32>
    tpu.vector_store %arg12[%c0_33, %c24], %76 {strides = array<i32>} : memref<8x32xf32, #tpu.memory_space<vmem>>, vector<8x8xf32>,
    %c0_34 = arith.constant 0 : index
    %c0_35 = arith.constant 0 : index
    %78 = vector.load %arg12[%c0_34, %c0_35] : memref<8x32xf32, #tpu.memory_space<vmem>>, vector<8x32xf32>
    %c0_36 = arith.constant 0 : index
    %c0_37 = arith.constant 0 : index
    %79 = vector.load %arg7[%c0_36, %c0_37] : memref<32x32xf32, #tpu.memory_space<vmem>>, vector<32x32xf32>
    %cst_38 = arith.constant dense<0.000000e+00> : vector<8x32xf32>
    %80 = tpu.matmul %78, %79, %cst_38 {dimension_numbers = #tpu.dot_dimension_numbers<[1], [0], [0], [1], [0, 0, 1, 1], [], []>} : vector<8x32xf32>, vector<32x32xf32>, vector<8x32xf32> -> vector<8x32xf32>
    %c0_39 = arith.constant 0 : index
    %c0_40 = arith.constant 0 : index
    %81 = vector.load %arg8[%c0_39, %c0_40] : memref<1x32xf32, #tpu.memory_space<vmem>>, vector<1x32xf32>
    %82 = vector.broadcast %81 : vector<1x32xf32> to vector<8x32xf32>
    %83 = arith.addf %80, %82 : vector<8x32xf32>
    %c0_41 = arith.constant 0 : index
    %c0_42 = arith.constant 0 : index
    %c0_43 = arith.constant 0 : index
    %84 = vector.load %arg9[%c0_41, %c0_42, %c0_43] : memref<1x8x32xf32, #tpu.memory_space<vmem>>, vector<1x8x32xf32>
    %85 = vector.shape_cast %84 : vector<1x8x32xf32> to vector<8x32xf32>
    %86 = vector.shape_cast %83 : vector<8x32xf32> to vector<1x8x32xf32>
    tpu.vector_store %arg9[%c0_41, %c0_42, %c0_43], %86 {strides = array<i32>} : memref<1x8x32xf32, #tpu.memory_space<vmem>>, vector<1x8x32xf32>,
    return
  }
  func.func @transform_0(%arg0: i32, %arg1: i32) -> (i32, i32, i32) {
    %c0_i32 = arith.constant 0 : i32
    %c0_i32_0 = arith.constant 0 : i32
    return %arg0, %arg1, %c0_i32 : i32, i32, i32
  }
  func.func @transform_1(%arg0: i32, %arg1: i32) -> (i32, i32, i32) {
    %c0_i32 = arith.constant 0 : i32
    %c0_i32_0 = arith.constant 0 : i32
    %c0_i32_1 = arith.constant 0 : i32
    return %arg0, %c0_i32, %c0_i32_0 : i32, i32, i32
  }
  func.func @transform_2(%arg0: i32, %arg1: i32) -> (i32, i32, i32) {
    %c0_i32 = arith.constant 0 : i32
    %c0_i32_0 = arith.constant 0 : i32
    %c0_i32_1 = arith.constant 0 : i32
    return %arg0, %c0_i32, %c0_i32_0 : i32, i32, i32
  }
  func.func @transform_3(%arg0: i32, %arg1: i32) -> (i32, i32, i32) {
    %c0_i32 = arith.constant 0 : i32
    %c0_i32_0 = arith.constant 0 : i32
    %c0_i32_1 = arith.constant 0 : i32
    %c0_i32_2 = arith.constant 0 : i32
    return %c0_i32, %c0_i32_0, %c0_i32_1 : i32, i32, i32
  }
  func.func @transform_4(%arg0: i32, %arg1: i32) -> (i32, i32, i32) {
    %c0_i32 = arith.constant 0 : i32
    %c0_i32_0 = arith.constant 0 : i32
    %c0_i32_1 = arith.constant 0 : i32
    %c0_i32_2 = arith.constant 0 : i32
    return %c0_i32, %c0_i32_0, %c0_i32_1 : i32, i32, i32
  }
  func.func @transform_5(%arg0: i32, %arg1: i32) -> (i32, i32) {
    %c0_i32 = arith.constant 0 : i32
    %c0_i32_0 = arith.constant 0 : i32
    %c0_i32_1 = arith.constant 0 : i32
    return %c0_i32, %c0_i32_0 : i32, i32
  }
  func.func @transform_6(%arg0: i32, %arg1: i32) -> (i32, i32) {
    %c0_i32 = arith.constant 0 : i32
    %c0_i32_0 = arith.constant 0 : i32
    %c0_i32_1 = arith.constant 0 : i32
    return %c0_i32, %c0_i32_0 : i32, i32
  }
  func.func @transform_7(%arg0: i32, %arg1: i32) -> (i32, i32, i32) {
    %c0_i32 = arith.constant 0 : i32
    %c0_i32_0 = arith.constant 0 : i32
    return %arg0, %arg1, %c0_i32 : i32, i32, i32
  }
}

</mosaic_0001>

<llo_original>
// kernel: tpu_custom_call.1
$region0: #{tpu_custom_call.1}
  #allocation0 [shape = 'u32[]', space=smem, size = 0x4, offset = 0x4, fixed_abs, tag = 'smem constant byte address 0x4 - core index']
  #allocation1 [shape = 'u32[144,128]{1,0:T(1,128)}', space=vmem, size = 0x12000, scoped, tag = 'internal scratch']
  #allocation2 [shape = 'f32[8,32]{1,0:T(8,128)}', space=vmem, size = 0x1000, scoped, tag = 'scratch operand']
  #allocation3 [shape = 'f32[8,32]{1,0:T(8,128)}', space=vmem, size = 0x1000, scoped, tag = 'scratch operand']
  #allocation4 [shape = 'f32[8,32]{1,0:T(8,128)}', space=vmem, size = 0x1000, scoped, tag = 'scratch operand']
  %s0 = inlined_call_operand.hbm [shape: f32[2,8,32], index: 0, kind: input, shape index: {}]
  %s1 = inlined_call_operand.hbm [shape: f32[2,8,32], index: 1, kind: input, shape index: {}]
  %s2 = inlined_call_operand.hbm [shape: f32[2,8,32], index: 2, kind: input, shape index: {}]
  %s3 = inlined_call_operand.hbm [shape: f32[3,32,32], index: 3, kind: input, shape index: {}]
  %s4 = inlined_call_operand.vmem [shape: f32[3,1,32], index: 4, kind: input, shape index: {}]
  %s5 = inlined_call_operand.hbm [shape: f32[32,32], index: 5, kind: input, shape index: {}]
  %s6 = inlined_call_operand.vmem [shape: f32[1,32], index: 6, kind: input, shape index: {}]
  %s7 = inlined_call_operand.hbm [shape: f32[2,8,32], index: 7, kind: output, shape index: {}]
  %s8 = sld [smem:[#allocation0]]
  $region85: #{tpu_custom_call.1} parent=0
    _
  %s10 = ssub.s32 1, %s8
  %s11 = scalar_select 0, %s10, %s8
  $region1: #{tpu_custom_call.1} parent=0
    #allocation5 [shape = 'u8[8192]{0}', space=vmem, size = 0x2000, scoped, tag = 'input window, operand 0']
    #allocation6 [shape = 's32[2]{0}', space=sflag, size = 0x8, scoped, tag = 'scoped memory for tpu_custom_call.1']
    #allocation7 [shape = 's32[2]{0}', space=sflag, size = 0x8, scoped, tag = 'scoped memory for tpu_custom_call.1']
    #allocation8 [shape = 'u8[4096]{0}', space=vmem, size = 0x1000, scoped, tag = 'input window, operand 1, single buffered']
    #allocation9 [shape = 's32[1]{0}', space=sflag, size = 0x4, scoped, tag = 'scoped memory for tpu_custom_call.1']
    #allocation10 [shape = 'u8[4096]{0}', space=vmem, size = 0x1000, scoped, tag = 'input window, operand 2, single buffered']
    #allocation11 [shape = 'u8[49152]{0}', space=vmem, size = 0xc000, scoped, tag = 'input window, operand 3, single buffered']
    #allocation12 [shape = 's32[1]{0}', space=sflag, size = 0x4, scoped, tag = 'scoped memory for tpu_custom_call.1']
    #allocation13 [shape = 'u8[16384]{0}', space=vmem, size = 0x4000, scoped, tag = 'input window, operand 5, single buffered']
    #allocation14 [shape = 'u8[8192]{0}', space=vmem, size = 0x2000, scoped, tag = 'output window, operand 0']
    %12 = vsyncpa [#allocation6], 0
    %s13 = scalar_lea.sflag [#allocation6], 1
    %14 = vsyncpa %s13, 0
    %15 = vsyncpa [#allocation9], 0
    %16 = vsyncpa [#allocation12], 0
    %17 = vsyncpa [#allocation7], 0
    %s18 = scalar_lea.sflag [#allocation7], 1
    %19 = vsyncpa %s18, 0
    loop: start=0, step=1, limit=4
    $region2: #{tpu_custom_call.1} parent=1 // loop_pre_header
      _
    $region3: #{tpu_custom_call.1} parent=1 // loop_header
      %s21 = sphi 0, %s25
      %p22 = scmp.ge.s32.totalorder %s21, 4
      %s28 = sphi 0, %s40
      %s29 = sphi 0, %s36
      %s30 = sphi 0, %s28
      %s31 = sphi 0, %s29
      %s32 = sphi 0, %s30
      %s33 = sphi 0, %s31
      %s45 = sphi 0, %s47
      %s48 = sphi 0, %s45
      %s49 = sphi 0, %s48
      %s65 = sphi 0, %s49
      %s71 = sphi 0, %s73
      %s74 = sphi 0, %s71
      %s75 = sphi 0, %s74
      %s91 = sphi 0, %s75
      %s97 = sphi 0, %s99
      %s100 = sphi 0, %s97
      %s101 = sphi 0, %s100
      %s117 = sphi 0, %s101
      %s121 = sphi 0, %s121
      %s123 = sphi 0, %s121
      %s124 = sphi 0, %s123
      %s138 = sphi 0, %s124
      %s142 = sphi 0, %s142
      %s144 = sphi 0, %s142
      %s145 = sphi 0, %s144
      %s159 = sphi 0, %s145
      %s163 = sphi 0, %s163
      %s165 = sphi 0, %s163
      %s166 = sphi 0, %s165
      %s180 = sphi 0, %s166
      %s184 = sphi 0, %s184
      %s186 = sphi 0, %s184
      %s187 = sphi 0, %s186
      %s201 = sphi 0, %s187
      %s209 = sphi 0, %s211
      %s212 = sphi 0, %s209
      %s213 = sphi 0, %s212
      %s229 = sphi 0, %s213
    $region4: #{tpu_custom_call.1} parent=1 // loop_header_branch
      %24 = sbr.rel (%p22) target = $region8
    $region5: #{tpu_custom_call.1} parent=1 // loop_body
      %s26 = ssub.s32 %s21, 1
      %s27 = ssub.s32 %s21, 2
      %s34 = sadd.s32 1, %s29
      %p35 = scmp.ge.s32.totalorder %s34, 1
      %s36 = scalar_select %p35, 0, %s34
      %s37 = sadd.s32 1, %s28
      %s38 = scalar_select %p35, %s37, %s28
      %p39 = scmp.ge.s32.totalorder %s38, 2
      %s40 = scalar_select %p39, 0, %s38
      %s41 = ssub.s32 %s28, %s40
      %s42 = ssub.s32 %s29, %s36
      %s43 = sor.u32 %s41, %s42
      %p44 = scmp.eq.s32.totalorder %s43, 0
      %s46 = sadd.s32 %s45, 1
      %s47 = scalar_select %p44, %s45, %s46
      %p50 = pneg %p44
      %p51 = scmp.eq.s32.totalorder %s21, 1
      %p52 = por %p50, %p51
      %p53 = scmp.ne.s32.totalorder %s45, %s48
      %p54 = scmp.eq.s32.totalorder %s21, 0
      %p55 = por %p53, %p54
      %p56 = scmp.ne.s32.totalorder %s45, %s48
      %p57 = scmp.eq.s32.totalorder %s26, 1
      %p58 = por %p56, %p57
      %p59 = scmp.ne.s32.totalorder %s48, %s49
      %p60 = scmp.eq.s32.totalorder %s26, 0
      %p61 = por %p59, %p60
      %p62 = scmp.ne.s32.totalorder %s48, %s49
      %p63 = scmp.eq.s32.totalorder %s27, 1
      %p64 = por %p62, %p63
      %p66 = scmp.ne.s32.totalorder %s49, %s65
      %p67 = scmp.eq.s32.totalorder %s27, 0
      %p68 = por %p66, %p67
      %s69 = ssub.s32 %s28, %s40
      %p70 = scmp.eq.s32.totalorder %s69, 0
      %s72 = sadd.s32 %s71, 1
      %s73 = scalar_select %p70, %s71, %s72
      %p76 = pneg %p70
      %p77 = scmp.eq.s32.totalorder %s21, 1
      %p78 = por %p76, %p77
      %p79 = scmp.ne.s32.totalorder %s71, %s74
      %p80 = scmp.eq.s32.totalorder %s21, 0
      %p81 = por %p79, %p80
      %p82 = scmp.ne.s32.totalorder %s71, %s74
      %p83 = scmp.eq.s32.totalorder %s26, 1
      %p84 = por %p82, %p83
      %p85 = scmp.ne.s32.totalorder %s74, %s75
      %p86 = scmp.eq.s32.totalorder %s26, 0
      %p87 = por %p85, %p86
      %p88 = scmp.ne.s32.totalorder %s74, %s75
      %p89 = scmp.eq.s32.totalorder %s27, 1
      %p90 = por %p88, %p89
      %p92 = scmp.ne.s32.totalorder %s75, %s91
      %p93 = scmp.eq.s32.totalorder %s27, 0
      %p94 = por %p92, %p93
      %s95 = ssub.s32 %s28, %s40
      %p96 = scmp.eq.s32.totalorder %s95, 0
      %s98 = sadd.s32 %s97, 1
      %s99 = scalar_select %p96, %s97, %s98
      %p102 = pneg %p96
      %p103 = scmp.eq.s32.totalorder %s21, 1
      %p104 = por %p102, %p103
      %p105 = scmp.ne.s32.totalorder %s97, %s100
      %p106 = scmp.eq.s32.totalorder %s21, 0
      %p107 = por %p105, %p106
      %p108 = scmp.ne.s32.totalorder %s97, %s100
      %p109 = scmp.eq.s32.totalorder %s26, 1
      %p110 = por %p108, %p109
      %p111 = scmp.ne.s32.totalorder %s100, %s101
      %p112 = scmp.eq.s32.totalorder %s26, 0
      %p113 = por %p111, %p112
      %p114 = scmp.ne.s32.totalorder %s100, %s101
      %p115 = scmp.eq.s32.totalorder %s27, 1
      %p116 = por %p114, %p115
      %p118 = scmp.ne.s32.totalorder %s101, %s117
      %p119 = scmp.eq.s32.totalorder %s27, 0
      %p120 = por %p118, %p119
      %s122 = sadd.s32 %s121, 1
      %p125 = scmp.eq.s32.totalorder %s21, 1
      %p126 = scmp.ne.s32.totalorder %s121, %s123
      %p127 = scmp.eq.s32.totalorder %s21, 0
      %p128 = por %p126, %p127
      %p129 = scmp.ne.s32.totalorder %s121, %s123
      %p130 = scmp.eq.s32.totalorder %s26, 1
      %p131 = por %p129, %p130
      %p132 = scmp.ne.s32.totalorder %s123, %s124
      %p133 = scmp.eq.s32.totalorder %s26, 0
      %p134 = por %p132, %p133
      %p135 = scmp.ne.s32.totalorder %s123, %s124
      %p136 = scmp.eq.s32.totalorder %s27, 1
      %p137 = por %p135, %p136
      %p139 = scmp.ne.s32.totalorder %s124, %s138
      %p140 = scmp.eq.s32.totalorder %s27, 0
      %p141 = por %p139, %p140
      %s143 = sadd.s32 %s142, 1
      %p146 = scmp.eq.s32.totalorder %s21, 1
      %p147 = scmp.ne.s32.totalorder %s142, %s144
      %p148 = scmp.eq.s32.totalorder %s21, 0
      %p149 = por %p147, %p148
      %p150 = scmp.ne.s32.totalorder %s142, %s144
      %p151 = scmp.eq.s32.totalorder %s26, 1
      %p152 = por %p150, %p151
      %p153 = scmp.ne.s32.totalorder %s144, %s145
      %p154 = scmp.eq.s32.totalorder %s26, 0
      %p155 = por %p153, %p154
      %p156 = scmp.ne.s32.totalorder %s144, %s145
      %p157 = scmp.eq.s32.totalorder %s27, 1
      %p158 = por %p156, %p157
      %p160 = scmp.ne.s32.totalorder %s145, %s159
      %p161 = scmp.eq.s32.totalorder %s27, 0
      %p162 = por %p160, %p161
      %s164 = sadd.s32 %s163, 1
      %p167 = scmp.eq.s32.totalorder %s21, 1
      %p168 = scmp.ne.s32.totalorder %s163, %s165
      %p169 = scmp.eq.s32.totalorder %s21, 0
      %p170 = por %p168, %p169
      %p171 = scmp.ne.s32.totalorder %s163, %s165
      %p172 = scmp.eq.s32.totalorder %s26, 1
      %p173 = por %p171, %p172
      %p174 = scmp.ne.s32.totalorder %s165, %s166
      %p175 = scmp.eq.s32.totalorder %s26, 0
      %p176 = por %p174, %p175
      %p177 = scmp.ne.s32.totalorder %s165, %s166
      %p178 = scmp.eq.s32.totalorder %s27, 1
      %p179 = por %p177, %p178
      %p181 = scmp.ne.s32.totalorder %s166, %s180
      %p182 = scmp.eq.s32.totalorder %s27, 0
      %p183 = por %p181, %p182
      %s185 = sadd.s32 %s184, 1
      %p188 = scmp.eq.s32.totalorder %s21, 1
      %p189 = scmp.ne.s32.totalorder %s184, %s186
      %p190 = scmp.eq.s32.totalorder %s21, 0
      %p191 = por %p189, %p190
      %p192 = scmp.ne.s32.totalorder %s184, %s186
      %p193 = scmp.eq.s32.totalorder %s26, 1
      %p194 = por %p192, %p193
      %p195 = scmp.ne.s32.totalorder %s186, %s187
      %p196 = scmp.eq.s32.totalorder %s26, 0
      %p197 = por %p195, %p196
      %p198 = scmp.ne.s32.totalorder %s186, %s187
      %p199 = scmp.eq.s32.totalorder %s27, 1
      %p200 = por %p198, %p199
      %p202 = scmp.ne.s32.totalorder %s187, %s201
      %p203 = scmp.eq.s32.totalorder %s27, 0
      %p204 = por %p202, %p203
      %s205 = ssub.s32 %s28, %s40
      %s206 = ssub.s32 %s29, %s36
      %s207 = sor.u32 %s205, %s206
      %p208 = scmp.eq.s32.totalorder %s207, 0
      %s210 = sadd.s32 %s209, 1
      %s211 = scalar_select %p208, %s209, %s210
      %p214 = pneg %p208
      %p215 = scmp.eq.s32.totalorder %s21, 1
      %p216 = por %p214, %p215
      %p217 = scmp.ne.s32.totalorder %s209, %s212
      %p218 = scmp.eq.s32.totalorder %s21, 0
      %p219 = por %p217, %p218
      %p220 = scmp.ne.s32.totalorder %s209, %s212
      %p221 = scmp.eq.s32.totalorder %s26, 1
      %p222 = por %p220, %p221
      %p223 = scmp.ne.s32.totalorder %s212, %s213
      %p224 = scmp.eq.s32.totalorder %s26, 0
      %p225 = por %p223, %p224
      %p226 = scmp.ne.s32.totalorder %s212, %s213
      %p227 = scmp.eq.s32.totalorder %s27, 1
      %p228 = por %p226, %p227
      %p230 = scmp.ne.s32.totalorder %s213, %s229
      %p231 = scmp.eq.s32.totalorder %s27, 0
      %p232 = por %p230, %p231
      %p233 = scmp.le.s32.totalorder 1, %s21
      %p234 = scmp.lt.s32.totalorder %s21, 3
      %p235 = pnand %p233, %p234
      %p236 = pneg %p235
      // Predicated region
      $region9: #{tpu_custom_call.1} parent=5 // pred_check
        _
      $region10: #{tpu_custom_call.1} parent=5 // pred_check_branch
        %238 = sbr.rel (%p235) target = $region12
      $region11: #{tpu_custom_call.1} parent=5 // pred_region
        %s239 = ssub.s32 %s21, 1
        // Predicated region
        $region13: #{tpu_custom_call.1} parent=11 // pred_check
          %p240 = pneg %p87
        $region14: #{tpu_custom_call.1} parent=11 // pred_check_branch
          %242 = sbr.rel (%p240) target = $region16
        $region15: #{tpu_custom_call.1} parent=11 // pred_region
          %s244 = ssub.s32 128, 128
          %245 = vsyncadd [#allocation9], %s244
          %s246 = smul.addr %s30, 128
          %s247 = scalar_lea.hbm %s1, %s246
          %s249 = sshll.u32 [#allocation8], 4
          %s250 = int_to_ptr.vmem [resolvable:$true] %s249
          %252 = dma.hbm_to_vmem [thread:$0]  %s247, 128, %s250, [#allocation9]
        $region16: #{tpu_custom_call.1} parent=11 // pred_fallthru
          _
        // Predicated region
        $region17: #{tpu_custom_call.1} parent=11 // pred_check
          %p253 = pneg %p113
        $region18: #{tpu_custom_call.1} parent=11 // pred_check_branch
          %255 = sbr.rel (%p253) target = $region20
        $region19: #{tpu_custom_call.1} parent=11 // pred_region
          %s257 = ssub.s32 128, 128
          %258 = vsyncadd [#allocation9], %s257
          %s259 = smul.addr %s30, 128
          %s260 = scalar_lea.hbm %s2, %s259
          %s262 = sshll.u32 [#allocation10], 4
          %s263 = int_to_ptr.vmem [resolvable:$true] %s262
          %265 = dma.hbm_to_vmem [thread:$0]  %s260, 128, %s263, [#allocation9]
        $region20: #{tpu_custom_call.1} parent=11 // pred_fallthru
          _
        // Predicated region
        $region21: #{tpu_custom_call.1} parent=11 // pred_check
          %p266 = pneg %p134
        $region22: #{tpu_custom_call.1} parent=11 // pred_check_branch
          %268 = sbr.rel (%p266) target = $region24
        $region23: #{tpu_custom_call.1} parent=11 // pred_region
          %s270 = ssub.s32 1536, 1536
          %271 = vsyncadd [#allocation12], %s270
          %s272 = sshll.u32 [#allocation11], 4
          %s273 = int_to_ptr.vmem [resolvable:$true] %s272
          %278 = dma.hbm_to_vmem [thread:$0]  %s3, 1536, %s273, [#allocation12], 128, 128, 8
        $region24: #{tpu_custom_call.1} parent=11 // pred_fallthru
          _
        // Predicated region
        $region25: #{tpu_custom_call.1} parent=11 // pred_check
          %p279 = pneg %p155
        $region26: #{tpu_custom_call.1} parent=11 // pred_check_branch
          %281 = sbr.rel (%p279) target = $region28
        $region27: #{tpu_custom_call.1} parent=11 // pred_region
          _
        $region28: #{tpu_custom_call.1} parent=11 // pred_fallthru
          _
        // Predicated region
        $region29: #{tpu_custom_call.1} parent=11 // pred_check
          %p282 = pneg %p176
        $region30: #{tpu_custom_call.1} parent=11 // pred_check_branch
          %284 = sbr.rel (%p282) target = $region32
        $region31: #{tpu_custom_call.1} parent=11 // pred_region
          %s286 = ssub.s32 512, 512
          %287 = vsyncadd [#allocation12], %s286
          %s288 = sshll.u32 [#allocation13], 4
          %s289 = int_to_ptr.vmem [resolvable:$true] %s288
          %294 = dma.hbm_to_vmem [thread:$0]  %s5, 512, %s289, [#allocation12], 128, 128, 8
        $region32: #{tpu_custom_call.1} parent=11 // pred_fallthru
          _
        // Predicated region
        $region33: #{tpu_custom_call.1} parent=11 // pred_check
          %p295 = pneg %p197
        $region34: #{tpu_custom_call.1} parent=11 // pred_check_branch
          %297 = sbr.rel (%p295) target = $region36
        $region35: #{tpu_custom_call.1} parent=11 // pred_region
          _
        $region36: #{tpu_custom_call.1} parent=11 // pred_fallthru
          _
      $region12: #{tpu_custom_call.1} parent=5 // pred_fallthru
        _
      %p298 = scmp.lt.s32.totalorder %s21, 2
      // Predicated region
      $region37: #{tpu_custom_call.1} parent=5 // pred_check
        %p299 = pneg %p298
      $region38: #{tpu_custom_call.1} parent=5 // pred_check_branch
        %301 = sbr.rel (%p299) target = $region40
      $region39: #{tpu_custom_call.1} parent=5 // pred_region
        // Predicated region
        $region41: #{tpu_custom_call.1} parent=39 // pred_check
          %p302 = pneg %p55
        $region42: #{tpu_custom_call.1} parent=39 // pred_check_branch
          %304 = sbr.rel (%p302) target = $region44
        $region43: #{tpu_custom_call.1} parent=39 // pred_region
          %s305 = sand.u32 %s45, 1
          %s306 = scalar_lea.sflag [#allocation6], %s305
          %s307 = sand.u32 %s45, 1
          %s308 = smul.addr %s307, 8
          %s309 = scalar_lea.vmem [#allocation5], %s308
          %s311 = ssub.s32 128, 128
          %312 = vsyncadd %s306, %s311
          %s313 = sadd.s32 %s29, %s28
          %s314 = smul.addr %s313, 128
          %s315 = scalar_lea.hbm %s0, %s314
          %s317 = sshll.u32 %s309, 4
          %s318 = int_to_ptr.vmem [resolvable:$true] %s317
          %320 = dma.hbm_to_vmem [thread:$0]  %s315, 128, %s318, %s306
        $region44: #{tpu_custom_call.1} parent=39 // pred_fallthru
          _
      $region40: #{tpu_custom_call.1} parent=5 // pred_fallthru
        _
      %p321 = scmp.le.s32.totalorder 1, %s21
      %p322 = scmp.lt.s32.totalorder %s21, 3
      %p323 = pnand %p321, %p322
      %p324 = pneg %p323
      // Predicated region
      $region45: #{tpu_custom_call.1} parent=5 // pred_check
        _
      $region46: #{tpu_custom_call.1} parent=5 // pred_check_branch
        %326 = sbr.rel (%p323) target = $region48
      $region47: #{tpu_custom_call.1} parent=5 // pred_region
        %s327 = ssub.s32 %s21, 1
        %s328 = sand.u32 %s48, 1
        %s329 = scalar_lea.sflag [#allocation6], %s328
        %s330 = sand.u32 %s48, 1
        %s331 = smul.addr %s330, 8
        %s332 = scalar_lea.vmem [#allocation5], %s331
        // Predicated region
        $region49: #{tpu_custom_call.1} parent=47 // pred_check
          %p333 = pneg %p61
        $region50: #{tpu_custom_call.1} parent=47 // pred_check_branch
          %335 = sbr.rel (%p333) target = $region52
        $region51: #{tpu_custom_call.1} parent=47 // pred_region
          %336 = dma.done %s329, 128
        $region52: #{tpu_custom_call.1} parent=47 // pred_fallthru
          _
        // Predicated region
        $region53: #{tpu_custom_call.1} parent=47 // pred_check
          %p337 = pneg %p87
        $region54: #{tpu_custom_call.1} parent=47 // pred_check_branch
          %339 = sbr.rel (%p337) target = $region56
        $region55: #{tpu_custom_call.1} parent=47 // pred_region
          %340 = dma.done [#allocation9], 128
        $region56: #{tpu_custom_call.1} parent=47 // pred_fallthru
          _
        // Predicated region
        $region57: #{tpu_custom_call.1} parent=47 // pred_check
          %p341 = pneg %p113
        $region58: #{tpu_custom_call.1} parent=47 // pred_check_branch
          %343 = sbr.rel (%p341) target = $region60
        $region59: #{tpu_custom_call.1} parent=47 // pred_region
          %344 = dma.done [#allocation9], 128
        $region60: #{tpu_custom_call.1} parent=47 // pred_fallthru
          _
        // Predicated region
        $region61: #{tpu_custom_call.1} parent=47 // pred_check
          %p345 = pneg %p134
        $region62: #{tpu_custom_call.1} parent=47 // pred_check_branch
          %347 = sbr.rel (%p345) target = $region64
        $region63: #{tpu_custom_call.1} parent=47 // pred_region
          %348 = dma.done [#allocation12], 1536
        $region64: #{tpu_custom_call.1} parent=47 // pred_fallthru
          _
        // Predicated region
        $region65: #{tpu_custom_call.1} parent=47 // pred_check
          %p349 = pneg %p176
        $region66: #{tpu_custom_call.1} parent=47 // pred_check_branch
          %351 = sbr.rel (%p349) target = $region68
        $region67: #{tpu_custom_call.1} parent=47 // pred_region
          %352 = dma.done [#allocation12], 512
        $region68: #{tpu_custom_call.1} parent=47 // pred_fallthru
          _
        %s353 = sand.u32 %s48, 1
        %s354 = scalar_lea.sflag [#allocation6], %s353
        %s355 = sand.u32 %s48, 1
        %s356 = smul.addr %s355, 8
        %s357 = scalar_lea.vmem [#allocation5], %s356
        %p358 = pneg %p61
        %p359 = pneg %p58
        %p360 = pneg %p87
        %p361 = pneg %p84
        %p362 = pneg %p113
        %p363 = pneg %p110
        %p364 = pneg %p134
        %p365 = pneg %p131
        %p366 = pneg %p155
        %p367 = pneg %p152
        %p368 = pneg %p176
        %p369 = pneg %p173
        %p370 = pneg %p197
        %p371 = pneg %p194
        %p372 = pneg %p225
        %p373 = pneg %p222
        %s374 = sand.u32 %s212, 1
        %s375 = scalar_lea.sflag [#allocation7], %s374
        %s376 = sand.u32 %s212, 1
        %s377 = smul.addr %s376, 8
        %s378 = scalar_lea.vmem [#allocation14], %s377
        %p379 = scmp.eq.s32.totalorder %s31, 0
        // Predicated region
        $region69: #{tpu_custom_call.1} parent=47 // pred_check
          %p380 = pneg %p379
        $region70: #{tpu_custom_call.1} parent=47 // pred_check_branch
          %382 = sbr.rel (%p380) target = $region72
        $region71: #{tpu_custom_call.1} parent=47 // pred_region
          %v383 = vld [vmem:[#allocation8] sm:$0xff]
          %v384 = vld [vmem:[#allocation10] sm:$0xff]
          %s385 = scalar_lea.vmem [#allocation11], 32
          %v386 = vld [vmem:[%s385] sm:$0xff]
          %v387 = vld [vmem:[%s385 + $0x8] sm:$0xff]
          %v388 = vld [vmem:[%s385 + $0x10] sm:$0xff]
          %v389 = vld [vmem:[%s385 + $0x18] sm:$0xff]
          %s390 = scalar_lea.vmem %s4, 1
          %v391 = vld [vmem:[%s390] sm:$0x1]
          %v393 = vlaneseq
          %v394 = vshrl.u32 %v393, 7
          %v395 = vsub.s32 0, %v394
          %v396 = vrot.slane %v391, %v395
          %vm398 = vcmask 261120
          %v400 = vsel %vm398, %v383, 0
          %402 = vmatprep.subr.mxu0 0.0
          %403 = vmatpush1.msra.mxu0 0.0
          %404 = vmatprep.subr.mxu0 0.0
          %405 = vmatpush1.msra.mxu0 0.0
          %406 = vmatprep.subr.mxu0 0.0
          %407 = vmatpush1.msra.mxu0 0.0
          %408 = vmatprep.subr.mxu0 0.0
          %409 = vmatpush1.msra.mxu0 0.0
          %410 = vmatprep.subr.mxu0 0.0
          %411 = vmatpush1.msra.mxu0 0.0
          %412 = vmatprep.subr.mxu0 0.0
          %413 = vmatpush1.msra.mxu0 0.0
          %414 = vmatprep.subr.mxu0 0.0
          %415 = vmatpush1.msra.mxu0 0.0
          %416 = vmatprep.subr.mxu0 0.0
          %417 = vmatpush1.msra.mxu0 0.0
          %418 = vmatprep.subr.mxu0 0.0
          %419 = vmatpush1.msra.mxu0 0.0
          %420 = vmatprep.subr.mxu0 0.0
          %421 = vmatpush1.msra.mxu0 0.0
          %422 = vmatprep.subr.mxu0 0.0
          %423 = vmatpush1.msra.mxu0 0.0
          %424 = vmatprep.subr.mxu0 0.0
          %425 = vmatpush1.msra.mxu0 0.0
          %426 = vmatprep.subr.mxu0 0.0
          %427 = vmatpush1.msra.mxu0 %v389
          %428 = vmatprep.subr.mxu0 0.0
          %429 = vmatpush1.msra.mxu0 %v388
          %430 = vmatprep.subr.mxu0 0.0
          %431 = vmatpush1.msra.mxu0 %v387
          %432 = vmatprep.subr.mxu0 0.0
          %433 = vmatpush1.msra.mxu0 %v386
          %434 = vmatprep.subr.mxu0 0.0
          %435 = vmatpush2.msra.mxu0 0.0
          %436 = vmatprep.subr.mxu0 0.0
          %437 = vmatpush2.msra.mxu0 0.0
          %438 = vmatprep.subr.mxu0 0.0
          %439 = vmatpush2.msra.mxu0 0.0
          %440 = vmatprep.subr.mxu0 0.0
          %441 = vmatpush2.msra.mxu0 0.0
          %442 = vmatprep.subr.mxu0 0.0
          %443 = vmatpush2.msra.mxu0 0.0
          %444 = vmatprep.subr.mxu0 0.0
          %445 = vmatpush2.msra.mxu0 0.0
          %446 = vmatprep.subr.mxu0 0.0
          %447 = vmatpush2.msra.mxu0 0.0
          %448 = vmatprep.subr.mxu0 0.0
          %449 = vmatpush2.msra.mxu0 0.0
          %450 = vmatprep.subr.mxu0 0.0
          %451 = vmatpush2.msra.mxu0 0.0
          %452 = vmatprep.subr.mxu0 0.0
          %453 = vmatpush2.msra.mxu0 0.0
          %454 = vmatprep.subr.mxu0 0.0
          %455 = vmatpush2.msra.mxu0 0.0
          %456 = vmatprep.subr.mxu0 0.0
          %457 = vmatpush2.msra.mxu0 0.0
          %458 = vmatprep.subr.mxu0 0.0
          %459 = vmatpush2.msra.mxu0 0.0
          %460 = vmatprep.subr.mxu0 0.0
          %461 = vmatpush2.msra.mxu0 0.0
          %462 = vmatprep.subr.mxu0 0.0
          %463 = vmatpush2.msra.mxu0 0.0
          %464 = vmatprep.subr.mxu0 0.0
          %465 = vmatpush2.msra.mxu0 0.0
          %466 = vmatprep.mubr.f32.mxu0 0.0
          %467 = vmatmul.mubr.f32.gmra.mxu0 %v400
          %v468 = vpop.f32.mrf.mxu0
          %v469 = vadd.f32 %v396, %v468
          %v470 = vpop.f32.mrf.mxu0
          %471 = vdwg.mxu0
          %472 = vst.msk [vmem:[#allocation2] sm:$0xff] %vm398, %v469
          %s473 = scalar_lea.vmem [#allocation11], 64
          %v474 = vld [vmem:[%s473] sm:$0xff]
          %v475 = vld [vmem:[%s473 + $0x8] sm:$0xff]
          %v476 = vld [vmem:[%s473 + $0x10] sm:$0xff]
          %v477 = vld [vmem:[%s473 + $0x18] sm:$0xff]
          %s478 = scalar_lea.vmem %s4, 2
          %v479 = vld [vmem:[%s478] sm:$0x1]
          %v481 = vlaneseq
          %v482 = vshrl.u32 %v481, 7
          %v483 = vsub.s32 0, %v482
          %v484 = vrot.slane %v479, %v483
          %v487 = vsel %vm398, %v384, 0
          %489 = vmatprep.subr.mxu0 0.0
          %490 = vmatpush1.msra.mxu0 0.0
          %491 = vmatprep.subr.mxu0 0.0
          %492 = vmatpush1.msra.mxu0 0.0
          %493 = vmatprep.subr.mxu0 0.0
          %494 = vmatpush1.msra.mxu0 0.0
          %495 = vmatprep.subr.mxu0 0.0
          %496 = vmatpush1.msra.mxu0 0.0
          %497 = vmatprep.subr.mxu0 0.0
          %498 = vmatpush1.msra.mxu0 0.0
          %499 = vmatprep.subr.mxu0 0.0
          %500 = vmatpush1.msra.mxu0 0.0
          %501 = vmatprep.subr.mxu0 0.0
          %502 = vmatpush1.msra.mxu0 0.0
          %503 = vmatprep.subr.mxu0 0.0
          %504 = vmatpush1.msra.mxu0 0.0
          %505 = vmatprep.subr.mxu0 0.0
          %506 = vmatpush1.msra.mxu0 0.0
          %507 = vmatprep.subr.mxu0 0.0
          %508 = vmatpush1.msra.mxu0 0.0
          %509 = vmatprep.subr.mxu0 0.0
          %510 = vmatpush1.msra.mxu0 0.0
          %511 = vmatprep.subr.mxu0 0.0
          %512 = vmatpush1.msra.mxu0 0.0
          %513 = vmatprep.subr.mxu0 0.0
          %514 = vmatpush1.msra.mxu0 %v477
          %515 = vmatprep.subr.mxu0 0.0
          %516 = vmatpush1.msra.mxu0 %v476
          %517 = vmatprep.subr.mxu0 0.0
          %518 = vmatpush1.msra.mxu0 %v475
          %519 = vmatprep.subr.mxu0 0.0
          %520 = vmatpush1.msra.mxu0 %v474
          %521 = vmatprep.subr.mxu0 0.0
          %522 = vmatpush2.msra.mxu0 0.0
          %523 = vmatprep.subr.mxu0 0.0
          %524 = vmatpush2.msra.mxu0 0.0
          %525 = vmatprep.subr.mxu0 0.0
          %526 = vmatpush2.msra.mxu0 0.0
          %527 = vmatprep.subr.mxu0 0.0
          %528 = vmatpush2.msra.mxu0 0.0
          %529 = vmatprep.subr.mxu0 0.0
          %530 = vmatpush2.msra.mxu0 0.0
          %531 = vmatprep.subr.mxu0 0.0
          %532 = vmatpush2.msra.mxu0 0.0
          %533 = vmatprep.subr.mxu0 0.0
          %534 = vmatpush2.msra.mxu0 0.0
          %535 = vmatprep.subr.mxu0 0.0
          %536 = vmatpush2.msra.mxu0 0.0
          %537 = vmatprep.subr.mxu0 0.0
          %538 = vmatpush2.msra.mxu0 0.0
          %539 = vmatprep.subr.mxu0 0.0
          %540 = vmatpush2.msra.mxu0 0.0
          %541 = vmatprep.subr.mxu0 0.0
          %542 = vmatpush2.msra.mxu0 0.0
          %543 = vmatprep.subr.mxu0 0.0
          %544 = vmatpush2.msra.mxu0 0.0
          %545 = vmatprep.subr.mxu0 0.0
          %546 = vmatpush2.msra.mxu0 0.0
          %547 = vmatprep.subr.mxu0 0.0
          %548 = vmatpush2.msra.mxu0 0.0
          %549 = vmatprep.subr.mxu0 0.0
          %550 = vmatpush2.msra.mxu0 0.0
          %551 = vmatprep.subr.mxu0 0.0
          %552 = vmatpush2.msra.mxu0 0.0
          %553 = vmatprep.mubr.f32.mxu0 0.0
          %554 = vmatmul.mubr.f32.gmra.mxu0 %v487
          %v555 = vpop.f32.mrf.mxu0
          %v556 = vadd.f32 %v484, %v555
          %v557 = vpop.f32.mrf.mxu0
          %558 = vdwg.mxu0
          %559 = vst.msk [vmem:[#allocation3] sm:$0xff] %vm398, %v556
        $region72: #{tpu_custom_call.1} parent=47 // pred_fallthru
          _
        %v560 = vld [vmem:[%s332] sm:$0xff]
        %v561 = vld [vmem:[#allocation11] sm:$0xff]
        %v562 = vld [vmem:[#allocation11 + $0x8] sm:$0xff]
        %v563 = vld [vmem:[#allocation11 + $0x10] sm:$0xff]
        %v564 = vld [vmem:[#allocation11 + $0x18] sm:$0xff]
        %v565 = vld [vmem:[%s4] sm:$0x1]
        %v567 = vlaneseq
        %v568 = vshrl.u32 %v567, 7
        %v569 = vsub.s32 0, %v568
        %v570 = vrot.slane %v565, %v569
        %vm572 = vcmask 261120
        %v574 = vsel %vm572, %v560, 0
        %576 = vmatprep.subr.mxu0 0.0
        %577 = vmatpush1.msra.mxu0 0.0
        %578 = vmatprep.subr.mxu0 0.0
        %579 = vmatpush1.msra.mxu0 0.0
        %580 = vmatprep.subr.mxu0 0.0
        %581 = vmatpush1.msra.mxu0 0.0
        %582 = vmatprep.subr.mxu0 0.0
        %583 = vmatpush1.msra.mxu0 0.0
        %584 = vmatprep.subr.mxu0 0.0
        %585 = vmatpush1.msra.mxu0 0.0
        %586 = vmatprep.subr.mxu0 0.0
        %587 = vmatpush1.msra.mxu0 0.0
        %588 = vmatprep.subr.mxu0 0.0
        %589 = vmatpush1.msra.mxu0 0.0
        %590 = vmatprep.subr.mxu0 0.0
        %591 = vmatpush1.msra.mxu0 0.0
        %592 = vmatprep.subr.mxu0 0.0
        %593 = vmatpush1.msra.mxu0 0.0
        %594 = vmatprep.subr.mxu0 0.0
        %595 = vmatpush1.msra.mxu0 0.0
        %596 = vmatprep.subr.mxu0 0.0
        %597 = vmatpush1.msra.mxu0 0.0
        %598 = vmatprep.subr.mxu0 0.0
        %599 = vmatpush1.msra.mxu0 0.0
        %600 = vmatprep.subr.mxu0 0.0
        %601 = vmatpush1.msra.mxu0 %v564
        %602 = vmatprep.subr.mxu0 0.0
        %603 = vmatpush1.msra.mxu0 %v563
        %604 = vmatprep.subr.mxu0 0.0
        %605 = vmatpush1.msra.mxu0 %v562
        %606 = vmatprep.subr.mxu0 0.0
        %607 = vmatpush1.msra.mxu0 %v561
        %608 = vmatprep.subr.mxu0 0.0
        %609 = vmatpush2.msra.mxu0 0.0
        %610 = vmatprep.subr.mxu0 0.0
        %611 = vmatpush2.msra.mxu0 0.0
        %612 = vmatprep.subr.mxu0 0.0
        %613 = vmatpush2.msra.mxu0 0.0
        %614 = vmatprep.subr.mxu0 0.0
        %615 = vmatpush2.msra.mxu0 0.0
        %616 = vmatprep.subr.mxu0 0.0
        %617 = vmatpush2.msra.mxu0 0.0
        %618 = vmatprep.subr.mxu0 0.0
        %619 = vmatpush2.msra.mxu0 0.0
        %620 = vmatprep.subr.mxu0 0.0
        %621 = vmatpush2.msra.mxu0 0.0
        %622 = vmatprep.subr.mxu0 0.0
        %623 = vmatpush2.msra.mxu0 0.0
        %624 = vmatprep.subr.mxu0 0.0
        %625 = vmatpush2.msra.mxu0 0.0
        %626 = vmatprep.subr.mxu0 0.0
        %627 = vmatpush2.msra.mxu0 0.0
        %628 = vmatprep.subr.mxu0 0.0
        %629 = vmatpush2.msra.mxu0 0.0
        %630 = vmatprep.subr.mxu0 0.0
        %631 = vmatpush2.msra.mxu0 0.0
        %632 = vmatprep.subr.mxu0 0.0
        %633 = vmatpush2.msra.mxu0 0.0
        %634 = vmatprep.subr.mxu0 0.0
        %635 = vmatpush2.msra.mxu0 0.0
        %636 = vmatprep.subr.mxu0 0.0
        %637 = vmatpush2.msra.mxu0 0.0
        %638 = vmatprep.subr.mxu0 0.0
        %639 = vmatpush2.msra.mxu0 0.0
        %640 = vmatprep.mubr.f32.mxu0 0.0
        %641 = vmatmul.mubr.f32.gmra.mxu0 %v574
        %v642 = vpop.f32.mrf.mxu0
        %v643 = vadd.f32 %v570, %v642
        %v644 = vpop.f32.mrf.mxu0
        %645 = vdwg.mxu0
        %v646 = vld [vmem:[#allocation2] sm:$0xff]
        %v647 = vld [vmem:[#allocation3] sm:$0xff]
        %vm648 = vcmask 64512
        %v650 = vsel %vm648, %v643, 0
        %v653 = vsel %vm648, %v646, 0
        %655 = vmatprep.subr.mxu0 0.0
        %656 = vmatpush1.xpose.msra.mxu0 0.0
        %657 = vmatprep.subr.mxu0 0.0
        %658 = vmatpush1.xpose.msra.mxu0 0.0
        %659 = vmatprep.subr.mxu0 0.0
        %660 = vmatpush1.xpose.msra.mxu0 0.0
        %661 = vmatprep.subr.mxu0 0.0
        %662 = vmatpush1.xpose.msra.mxu0 0.0
        %663 = vmatprep.subr.mxu0 0.0
        %664 = vmatpush1.xpose.msra.mxu0 0.0
        %665 = vmatprep.subr.mxu0 0.0
        %666 = vmatpush1.xpose.msra.mxu0 0.0
        %667 = vmatprep.subr.mxu0 0.0
        %668 = vmatpush1.xpose.msra.mxu0 0.0
        %669 = vmatprep.subr.mxu0 0.0
        %670 = vmatpush1.xpose.msra.mxu0 0.0
        %671 = vmatprep.subr.mxu0 0.0
        %672 = vmatpush1.xpose.msra.mxu0 0.0
        %673 = vmatprep.subr.mxu0 0.0
        %674 = vmatpush1.xpose.msra.mxu0 0.0
        %675 = vmatprep.subr.mxu0 0.0
        %676 = vmatpush1.xpose.msra.mxu0 0.0
        %677 = vmatprep.subr.mxu0 0.0
        %678 = vmatpush1.xpose.msra.mxu0 0.0
        %679 = vmatprep.subr.mxu0 0.0
        %680 = vmatpush1.xpose.msra.mxu0 0.0
        %681 = vmatprep.subr.mxu0 0.0
        %682 = vmatpush1.xpose.msra.mxu0 0.0
        %683 = vmatprep.subr.mxu0 0.0
        %684 = vmatpush1.xpose.msra.mxu0 0.0
        %685 = vmatprep.subr.mxu0 0.0
        %686 = vmatpush1.xpose.msra.mxu0 %v653
        %687 = vmatprep.subr.mxu0 0.0
        %688 = vmatpush2.xpose.msra.mxu0 0.0
        %689 = vmatprep.subr.mxu0 0.0
        %690 = vmatpush2.xpose.msra.mxu0 0.0
        %691 = vmatprep.subr.mxu0 0.0
        %692 = vmatpush2.xpose.msra.mxu0 0.0
        %693 = vmatprep.subr.mxu0 0.0
        %694 = vmatpush2.xpose.msra.mxu0 0.0
        %695 = vmatprep.subr.mxu0 0.0
        %696 = vmatpush2.xpose.msra.mxu0 0.0
        %697 = vmatprep.subr.mxu0 0.0
        %698 = vmatpush2.xpose.msra.mxu0 0.0
        %699 = vmatprep.subr.mxu0 0.0
        %700 = vmatpush2.xpose.msra.mxu0 0.0
        %701 = vmatprep.subr.mxu0 0.0
        %702 = vmatpush2.xpose.msra.mxu0 0.0
        %703 = vmatprep.subr.mxu0 0.0
        %704 = vmatpush2.xpose.msra.mxu0 0.0
        %705 = vmatprep.subr.mxu0 0.0
        %706 = vmatpush2.xpose.msra.mxu0 0.0
        %707 = vmatprep.subr.mxu0 0.0
        %708 = vmatpush2.xpose.msra.mxu0 0.0
        %709 = vmatprep.subr.mxu0 0.0
        %710 = vmatpush2.xpose.msra.mxu0 0.0
        %711 = vmatprep.subr.mxu0 0.0
        %712 = vmatpush2.xpose.msra.mxu0 0.0
        %713 = vmatprep.subr.mxu0 0.0
        %714 = vmatpush2.xpose.msra.mxu0 0.0
        %715 = vmatprep.subr.mxu0 0.0
        %716 = vmatpush2.xpose.msra.mxu0 0.0
        %717 = vmatprep.subr.mxu0 0.0
        %718 = vmatpush2.xpose.msra.mxu0 0.0
        %719 = vmatprep.mubr.f32.mxu0 0.0
        %720 = vmatmul.mubr.f32.gmra.mxu0 %v650
        %v721 = vpop.f32.mrf.mxu0
        %v722 = vadd.f32 0.0, %v721
        %v723 = vpop.f32.mrf.mxu0
        %724 = vdwg.mxu0
        %v725 = vsel %vm648, %v722, -inf
        %726 = vmax.xlane.f32.xlu0 %v725
        %v727 = vpop.xlane.xlu0 %726
        %v728 = vsub.f32 %v722, %v727
        %v729 = vmul.f32 %v728, 1.442695
        %v730 = vpow.pop %v729
        %v732 = vsel %vm648, %v730, 0
        %734 = vmatprep.subr.mxu0 0.0
        %735 = vmatpush1.msra.mxu0 0.0
        %736 = vmatprep.subr.mxu0 0.0
        %737 = vmatpush1.msra.mxu0 0.0
        %738 = vmatprep.subr.mxu0 0.0
        %739 = vmatpush1.msra.mxu0 0.0
        %740 = vmatprep.subr.mxu0 0.0
        %741 = vmatpush1.msra.mxu0 0.0
        %742 = vmatprep.subr.mxu0 0.0
        %743 = vmatpush1.msra.mxu0 0.0
        %744 = vmatprep.subr.mxu0 0.0
        %745 = vmatpush1.msra.mxu0 0.0
        %746 = vmatprep.subr.mxu0 0.0
        %747 = vmatpush1.msra.mxu0 0.0
        %748 = vmatprep.subr.mxu0 0.0
        %749 = vmatpush1.msra.mxu0 0.0
        %750 = vmatprep.subr.mxu0 0.0
        %751 = vmatpush1.msra.mxu0 0.0
        %752 = vmatprep.subr.mxu0 0.0
        %753 = vmatpush1.msra.mxu0 0.0
        %754 = vmatprep.subr.mxu0 0.0
        %755 = vmatpush1.msra.mxu0 0.0
        %756 = vmatprep.subr.mxu0 0.0
        %757 = vmatpush1.msra.mxu0 0.0
        %758 = vmatprep.subr.mxu0 0.0
        %759 = vmatpush1.msra.mxu0 0.0
        %760 = vmatprep.subr.mxu0 0.0
        %761 = vmatpush1.msra.mxu0 0.0
        %762 = vmatprep.subr.mxu0 0.0
        %763 = vmatpush1.msra.mxu0 0.0
        %764 = vmatprep.subr.mxu0 0.0
        %765 = vmatpush1.msra.mxu0 %v647
        %766 = vmatprep.subr.mxu0 0.0
        %767 = vmatpush2.msra.mxu0 0.0
        %768 = vmatprep.subr.mxu0 0.0
        %769 = vmatpush2.msra.mxu0 0.0
        %770 = vmatprep.subr.mxu0 0.0
        %771 = vmatpush2.msra.mxu0 0.0
        %772 = vmatprep.subr.mxu0 0.0
        %773 = vmatpush2.msra.mxu0 0.0
        %774 = vmatprep.subr.mxu0 0.0
        %775 = vmatpush2.msra.mxu0 0.0
        %776 = vmatprep.subr.mxu0 0.0
        %777 = vmatpush2.msra.mxu0 0.0
        %778 = vmatprep.subr.mxu0 0.0
        %779 = vmatpush2.msra.mxu0 0.0
        %780 = vmatprep.subr.mxu0 0.0
        %781 = vmatpush2.msra.mxu0 0.0
        %782 = vmatprep.subr.mxu0 0.0
        %783 = vmatpush2.msra.mxu0 0.0
        %784 = vmatprep.subr.mxu0 0.0
        %785 = vmatpush2.msra.mxu0 0.0
        %786 = vmatprep.subr.mxu0 0.0
        %787 = vmatpush2.msra.mxu0 0.0
        %788 = vmatprep.subr.mxu0 0.0
        %789 = vmatpush2.msra.mxu0 0.0
        %790 = vmatprep.subr.mxu0 0.0
        %791 = vmatpush2.msra.mxu0 0.0
        %792 = vmatprep.subr.mxu0 0.0
        %793 = vmatpush2.msra.mxu0 0.0
        %794 = vmatprep.subr.mxu0 0.0
        %795 = vmatpush2.msra.mxu0 0.0
        %796 = vmatprep.subr.mxu0 0.0
        %797 = vmatpush2.msra.mxu0 0.0
        %798 = vmatprep.mubr.f32.mxu0 0.0
        %799 = vmatmul.mubr.f32.gmra.mxu0 %v732
        %v800 = vpop.f32.mrf.mxu0
        %v801 = vadd.f32 0.0, %v800
        %v802 = vpop.f32.mrf.mxu0
        %803 = vdwg.mxu0
        %v804 = vsel %vm648, %v730, 0.0
        %805 = vadd.xlane.f32.xlu0 %v804
        %v806 = vpop.xlane.xlu0 %805
        %v807 = vrcp.pop %v806
        %v808 = vmul.f32 %v801, %v807
        %809 = vst.msk [vmem:[#allocation4] sm:$0xff] %vm648, %v808
        %810 = vrot.lane.b32.xlu0 %v643, 120
        %v811 = vpop.permute.xlu0 %810
        %812 = vrot.lane.b32.xlu0 %v646, 120
        %v813 = vpop.permute.xlu0 %812
        %v814 = vsel %vm648, %v811, 0
        %v816 = vsel %vm648, %v813, 0
        %818 = vmatprep.subr.mxu0 0.0
        %819 = vmatpush1.xpose.msra.mxu0 0.0
        %820 = vmatprep.subr.mxu0 0.0
        %821 = vmatpush1.xpose.msra.mxu0 0.0
        %822 = vmatprep.subr.mxu0 0.0
        %823 = vmatpush1.xpose.msra.mxu0 0.0
        %824 = vmatprep.subr.mxu0 0.0
        %825 = vmatpush1.xpose.msra.mxu0 0.0
        %826 = vmatprep.subr.mxu0 0.0
        %827 = vmatpush1.xpose.msra.mxu0 0.0
        %828 = vmatprep.subr.mxu0 0.0
        %829 = vmatpush1.xpose.msra.mxu0 0.0
        %830 = vmatprep.subr.mxu0 0.0
        %831 = vmatpush1.xpose.msra.mxu0 0.0
        %832 = vmatprep.subr.mxu0 0.0
        %833 = vmatpush1.xpose.msra.mxu0 0.0
        %834 = vmatprep.subr.mxu0 0.0
        %835 = vmatpush1.xpose.msra.mxu0 0.0
        %836 = vmatprep.subr.mxu0 0.0
        %837 = vmatpush1.xpose.msra.mxu0 0.0
        %838 = vmatprep.subr.mxu0 0.0
        %839 = vmatpush1.xpose.msra.mxu0 0.0
        %840 = vmatprep.subr.mxu0 0.0
        %841 = vmatpush1.xpose.msra.mxu0 0.0
        %842 = vmatprep.subr.mxu0 0.0
        %843 = vmatpush1.xpose.msra.mxu0 0.0
        %844 = vmatprep.subr.mxu0 0.0
        %845 = vmatpush1.xpose.msra.mxu0 0.0
        %846 = vmatprep.subr.mxu0 0.0
        %847 = vmatpush1.xpose.msra.mxu0 0.0
        %848 = vmatprep.subr.mxu0 0.0
        %849 = vmatpush1.xpose.msra.mxu0 %v816
        %850 = vmatprep.subr.mxu0 0.0
        %851 = vmatpush2.xpose.msra.mxu0 0.0
        %852 = vmatprep.subr.mxu0 0.0
        %853 = vmatpush2.xpose.msra.mxu0 0.0
        %854 = vmatprep.subr.mxu0 0.0
        %855 = vmatpush2.xpose.msra.mxu0 0.0
        %856 = vmatprep.subr.mxu0 0.0
        %857 = vmatpush2.xpose.msra.mxu0 0.0
        %858 = vmatprep.subr.mxu0 0.0
        %859 = vmatpush2.xpose.msra.mxu0 0.0
        %860 = vmatprep.subr.mxu0 0.0
        %861 = vmatpush2.xpose.msra.mxu0 0.0
        %862 = vmatprep.subr.mxu0 0.0
        %863 = vmatpush2.xpose.msra.mxu0 0.0
        %864 = vmatprep.subr.mxu0 0.0
        %865 = vmatpush2.xpose.msra.mxu0 0.0
        %866 = vmatprep.subr.mxu0 0.0
        %867 = vmatpush2.xpose.msra.mxu0 0.0
        %868 = vmatprep.subr.mxu0 0.0
        %869 = vmatpush2.xpose.msra.mxu0 0.0
        %870 = vmatprep.subr.mxu0 0.0
        %871 = vmatpush2.xpose.msra.mxu0 0.0
        %872 = vmatprep.subr.mxu0 0.0
        %873 = vmatpush2.xpose.msra.mxu0 0.0
        %874 = vmatprep.subr.mxu0 0.0
        %875 = vmatpush2.xpose.msra.mxu0 0.0
        %876 = vmatprep.subr.mxu0 0.0
        %877 = vmatpush2.xpose.msra.mxu0 0.0
        %878 = vmatprep.subr.mxu0 0.0
        %879 = vmatpush2.xpose.msra.mxu0 0.0
        %880 = vmatprep.subr.mxu0 0.0
        %881 = vmatpush2.xpose.msra.mxu0 0.0
        %882 = vmatprep.mubr.f32.mxu0 0.0
        %883 = vmatmul.mubr.f32.gmra.mxu0 %v814
        %v884 = vpop.f32.mrf.mxu0
        %v885 = vadd.f32 0.0, %v884
        %v886 = vpop.f32.mrf.mxu0
        %887 = vdwg.mxu0
        %v888 = vsel %vm648, %v885, -inf
        %889 = vmax.xlane.f32.xlu0 %v888
        %v890 = vpop.xlane.xlu0 %889
        %v891 = vsub.f32 %v885, %v890
        %v892 = vmul.f32 %v891, 1.442695
        %v893 = vpow.pop %v892
        %895 = vrot.lane.b32.xlu0 %v647, 120
        %v896 = vpop.permute.xlu0 %895
        %v899 = vsel %vm648, %v893, 0
        %901 = vmatprep.subr.mxu0 0.0
        %902 = vmatpush1.msra.mxu0 0.0
        %903 = vmatprep.subr.mxu0 0.0
        %904 = vmatpush1.msra.mxu0 0.0
        %905 = vmatprep.subr.mxu0 0.0
        %906 = vmatpush1.msra.mxu0 0.0
        %907 = vmatprep.subr.mxu0 0.0
        %908 = vmatpush1.msra.mxu0 0.0
        %909 = vmatprep.subr.mxu0 0.0
        %910 = vmatpush1.msra.mxu0 0.0
        %911 = vmatprep.subr.mxu0 0.0
        %912 = vmatpush1.msra.mxu0 0.0
        %913 = vmatprep.subr.mxu0 0.0
        %914 = vmatpush1.msra.mxu0 0.0
        %915 = vmatprep.subr.mxu0 0.0
        %916 = vmatpush1.msra.mxu0 0.0
        %917 = vmatprep.subr.mxu0 0.0
        %918 = vmatpush1.msra.mxu0 0.0
        %919 = vmatprep.subr.mxu0 0.0
        %920 = vmatpush1.msra.mxu0 0.0
        %921 = vmatprep.subr.mxu0 0.0
        %922 = vmatpush1.msra.mxu0 0.0
        %923 = vmatprep.subr.mxu0 0.0
        %924 = vmatpush1.msra.mxu0 0.0
        %925 = vmatprep.subr.mxu0 0.0
        %926 = vmatpush1.msra.mxu0 0.0
        %927 = vmatprep.subr.mxu0 0.0
        %928 = vmatpush1.msra.mxu0 0.0
        %929 = vmatprep.subr.mxu0 0.0
        %930 = vmatpush1.msra.mxu0 0.0
        %931 = vmatprep.subr.mxu0 0.0
        %932 = vmatpush1.msra.mxu0 %v896
        %933 = vmatprep.subr.mxu0 0.0
        %934 = vmatpush2.msra.mxu0 0.0
        %935 = vmatprep.subr.mxu0 0.0
        %936 = vmatpush2.msra.mxu0 0.0
        %937 = vmatprep.subr.mxu0 0.0
        %938 = vmatpush2.msra.mxu0 0.0
        %939 = vmatprep.subr.mxu0 0.0
        %940 = vmatpush2.msra.mxu0 0.0
        %941 = vmatprep.subr.mxu0 0.0
        %942 = vmatpush2.msra.mxu0 0.0
        %943 = vmatprep.subr.mxu0 0.0
        %944 = vmatpush2.msra.mxu0 0.0
        %945 = vmatprep.subr.mxu0 0.0
        %946 = vmatpush2.msra.mxu0 0.0
        %947 = vmatprep.subr.mxu0 0.0
        %948 = vmatpush2.msra.mxu0 0.0
        %949 = vmatprep.subr.mxu0 0.0
        %950 = vmatpush2.msra.mxu0 0.0
        %951 = vmatprep.subr.mxu0 0.0
        %952 = vmatpush2.msra.mxu0 0.0
        %953 = vmatprep.subr.mxu0 0.0
        %954 = vmatpush2.msra.mxu0 0.0
        %955 = vmatprep.subr.mxu0 0.0
        %956 = vmatpush2.msra.mxu0 0.0
        %957 = vmatprep.subr.mxu0 0.0
        %958 = vmatpush2.msra.mxu0 0.0
        %959 = vmatprep.subr.mxu0 0.0
        %960 = vmatpush2.msra.mxu0 0.0
        %961 = vmatprep.subr.mxu0 0.0
        %962 = vmatpush2.msra.mxu0 0.0
        %963 = vmatprep.subr.mxu0 0.0
        %964 = vmatpush2.msra.mxu0 0.0
        %965 = vmatprep.mubr.f32.mxu0 0.0
        %966 = vmatmul.mubr.f32.gmra.mxu0 %v899
        %v967 = vpop.f32.mrf.mxu0
        %v968 = vadd.f32 0.0, %v967
        %v969 = vpop.f32.mrf.mxu0
        %970 = vdwg.mxu0
        %v971 = vsel %vm648, %v893, 0.0
        %972 = vadd.xlane.f32.xlu0 %v971
        %v973 = vpop.xlane.xlu0 %972
        %v974 = vrcp.pop %v973
        %v975 = vmul.f32 %v968, %v974
        %977 = vrot.lane.b32.xlu0 %v975, 8
        %v978 = vpop.permute.xlu0 %977
        %vm980 = vcmask 130112
        %981 = vst.msk [vmem:[#allocation4] sm:$0xff] %vm980, %v978
        %982 = vrot.lane.b32.xlu0 %v643, 112
        %v983 = vpop.permute.xlu0 %982
        %984 = vrot.lane.b32.xlu0 %v646, 112
        %v985 = vpop.permute.xlu0 %984
        %v986 = vsel %vm648, %v983, 0
        %v988 = vsel %vm648, %v985, 0
        %990 = vmatprep.subr.mxu0 0.0
        %991 = vmatpush1.xpose.msra.mxu0 0.0
        %992 = vmatprep.subr.mxu0 0.0
        %993 = vmatpush1.xpose.msra.mxu0 0.0
        %994 = vmatprep.subr.mxu0 0.0
        %995 = vmatpush1.xpose.msra.mxu0 0.0
        %996 = vmatprep.subr.mxu0 0.0
        %997 = vmatpush1.xpose.msra.mxu0 0.0
        %998 = vmatprep.subr.mxu0 0.0
        %999 = vmatpush1.xpose.msra.mxu0 0.0
        %1000 = vmatprep.subr.mxu0 0.0
        %1001 = vmatpush1.xpose.msra.mxu0 0.0
        %1002 = vmatprep.subr.mxu0 0.0
        %1003 = vmatpush1.xpose.msra.mxu0 0.0
        %1004 = vmatprep.subr.mxu0 0.0
        %1005 = vmatpush1.xpose.msra.mxu0 0.0
        %1006 = vmatprep.subr.mxu0 0.0
        %1007 = vmatpush1.xpose.msra.mxu0 0.0
        %1008 = vmatprep.subr.mxu0 0.0
        %1009 = vmatpush1.xpose.msra.mxu0 0.0
        %1010 = vmatprep.subr.mxu0 0.0
        %1011 = vmatpush1.xpose.msra.mxu0 0.0
        %1012 = vmatprep.subr.mxu0 0.0
        %1013 = vmatpush1.xpose.msra.mxu0 0.0
        %1014 = vmatprep.subr.mxu0 0.0
        %1015 = vmatpush1.xpose.msra.mxu0 0.0
        %1016 = vmatprep.subr.mxu0 0.0
        %1017 = vmatpush1.xpose.msra.mxu0 0.0
        %1018 = vmatprep.subr.mxu0 0.0
        %1019 = vmatpush1.xpose.msra.mxu0 0.0
        %1020 = vmatprep.subr.mxu0 0.0
        %1021 = vmatpush1.xpose.msra.mxu0 %v988
        %1022 = vmatprep.subr.mxu0 0.0
        %1023 = vmatpush2.xpose.msra.mxu0 0.0
        %1024 = vmatprep.subr.mxu0 0.0
        %1025 = vmatpush2.xpose.msra.mxu0 0.0
        %1026 = vmatprep.subr.mxu0 0.0
        %1027 = vmatpush2.xpose.msra.mxu0 0.0
        %1028 = vmatprep.subr.mxu0 0.0
        %1029 = vmatpush2.xpose.msra.mxu0 0.0
        %1030 = vmatprep.subr.mxu0 0.0
        %1031 = vmatpush2.xpose.msra.mxu0 0.0
        %1032 = vmatprep.subr.mxu0 0.0
        %1033 = vmatpush2.xpose.msra.mxu0 0.0
        %1034 = vmatprep.subr.mxu0 0.0
        %1035 = vmatpush2.xpose.msra.mxu0 0.0
        %1036 = vmatprep.subr.mxu0 0.0
        %1037 = vmatpush2.xpose.msra.mxu0 0.0
        %1038 = vmatprep.subr.mxu0 0.0
        %1039 = vmatpush2.xpose.msra.mxu0 0.0
        %1040 = vmatprep.subr.mxu0 0.0
        %1041 = vmatpush2.xpose.msra.mxu0 0.0
        %1042 = vmatprep.subr.mxu0 0.0
        %1043 = vmatpush2.xpose.msra.mxu0 0.0
        %1044 = vmatprep.subr.mxu0 0.0
        %1045 = vmatpush2.xpose.msra.mxu0 0.0
        %1046 = vmatprep.subr.mxu0 0.0
        %1047 = vmatpush2.xpose.msra.mxu0 0.0
        %1048 = vmatprep.subr.mxu0 0.0
        %1049 = vmatpush2.xpose.msra.mxu0 0.0
        %1050 = vmatprep.subr.mxu0 0.0
        %1051 = vmatpush2.xpose.msra.mxu0 0.0
        %1052 = vmatprep.subr.mxu0 0.0
        %1053 = vmatpush2.xpose.msra.mxu0 0.0
        %1054 = vmatprep.mubr.f32.mxu0 0.0
        %1055 = vmatmul.mubr.f32.gmra.mxu0 %v986
        %v1056 = vpop.f32.mrf.mxu0
        %v1057 = vadd.f32 0.0, %v1056
        %v1058 = vpop.f32.mrf.mxu0
        %1059 = vdwg.mxu0
        %v1060 = vsel %vm648, %v1057, -inf
        %1061 = vmax.xlane.f32.xlu0 %v1060
        %v1062 = vpop.xlane.xlu0 %1061
        %v1063 = vsub.f32 %v1057, %v1062
        %v1064 = vmul.f32 %v1063, 1.442695
        %v1065 = vpow.pop %v1064
        %1066 = vrot.lane.b32.xlu0 %v647, 112
        %v1067 = vpop.permute.xlu0 %1066
        %v1070 = vsel %vm648, %v1065, 0
        %1072 = vmatprep.subr.mxu0 0.0
        %1073 = vmatpush1.msra.mxu0 0.0
        %1074 = vmatprep.subr.mxu0 0.0
        %1075 = vmatpush1.msra.mxu0 0.0
        %1076 = vmatprep.subr.mxu0 0.0
        %1077 = vmatpush1.msra.mxu0 0.0
        %1078 = vmatprep.subr.mxu0 0.0
        %1079 = vmatpush1.msra.mxu0 0.0
        %1080 = vmatprep.subr.mxu0 0.0
        %1081 = vmatpush1.msra.mxu0 0.0
        %1082 = vmatprep.subr.mxu0 0.0
        %1083 = vmatpush1.msra.mxu0 0.0
        %1084 = vmatprep.subr.mxu0 0.0
        %1085 = vmatpush1.msra.mxu0 0.0
        %1086 = vmatprep.subr.mxu0 0.0
        %1087 = vmatpush1.msra.mxu0 0.0
        %1088 = vmatprep.subr.mxu0 0.0
        %1089 = vmatpush1.msra.mxu0 0.0
        %1090 = vmatprep.subr.mxu0 0.0
        %1091 = vmatpush1.msra.mxu0 0.0
        %1092 = vmatprep.subr.mxu0 0.0
        %1093 = vmatpush1.msra.mxu0 0.0
        %1094 = vmatprep.subr.mxu0 0.0
        %1095 = vmatpush1.msra.mxu0 0.0
        %1096 = vmatprep.subr.mxu0 0.0
        %1097 = vmatpush1.msra.mxu0 0.0
        %1098 = vmatprep.subr.mxu0 0.0
        %1099 = vmatpush1.msra.mxu0 0.0
        %1100 = vmatprep.subr.mxu0 0.0
        %1101 = vmatpush1.msra.mxu0 0.0
        %1102 = vmatprep.subr.mxu0 0.0
        %1103 = vmatpush1.msra.mxu0 %v1067
        %1104 = vmatprep.subr.mxu0 0.0
        %1105 = vmatpush2.msra.mxu0 0.0
        %1106 = vmatprep.subr.mxu0 0.0
        %1107 = vmatpush2.msra.mxu0 0.0
        %1108 = vmatprep.subr.mxu0 0.0
        %1109 = vmatpush2.msra.mxu0 0.0
        %1110 = vmatprep.subr.mxu0 0.0
        %1111 = vmatpush2.msra.mxu0 0.0
        %1112 = vmatprep.subr.mxu0 0.0
        %1113 = vmatpush2.msra.mxu0 0.0
        %1114 = vmatprep.subr.mxu0 0.0
        %1115 = vmatpush2.msra.mxu0 0.0
        %1116 = vmatprep.subr.mxu0 0.0
        %1117 = vmatpush2.msra.mxu0 0.0
        %1118 = vmatprep.subr.mxu0 0.0
        %1119 = vmatpush2.msra.mxu0 0.0
        %1120 = vmatprep.subr.mxu0 0.0
        %1121 = vmatpush2.msra.mxu0 0.0
        %1122 = vmatprep.subr.mxu0 0.0
        %1123 = vmatpush2.msra.mxu0 0.0
        %1124 = vmatprep.subr.mxu0 0.0
        %1125 = vmatpush2.msra.mxu0 0.0
        %1126 = vmatprep.subr.mxu0 0.0
        %1127 = vmatpush2.msra.mxu0 0.0
        %1128 = vmatprep.subr.mxu0 0.0
        %1129 = vmatpush2.msra.mxu0 0.0
        %1130 = vmatprep.subr.mxu0 0.0
        %1131 = vmatpush2.msra.mxu0 0.0
        %1132 = vmatprep.subr.mxu0 0.0
        %1133 = vmatpush2.msra.mxu0 0.0
        %1134 = vmatprep.subr.mxu0 0.0
        %1135 = vmatpush2.msra.mxu0 0.0
        %1136 = vmatprep.mubr.f32.mxu0 0.0
        %1137 = vmatmul.mubr.f32.gmra.mxu0 %v1070
        %v1138 = vpop.f32.mrf.mxu0
        %v1139 = vadd.f32 0.0, %v1138
        %v1140 = vpop.f32.mrf.mxu0
        %1141 = vdwg.mxu0
        %v1142 = vsel %vm648, %v1065, 0.0
        %1143 = vadd.xlane.f32.xlu0 %v1142
        %v1144 = vpop.xlane.xlu0 %1143
        %v1145 = vrcp.pop %v1144
        %v1146 = vmul.f32 %v1139, %v1145
        %1148 = vrot.lane.b32.xlu0 %v1146, 16
        %v1149 = vpop.permute.xlu0 %1148
        %vm1151 = vcmask 195712
        %1152 = vst.msk [vmem:[#allocation4] sm:$0xff] %vm1151, %v1149
        %1153 = vrot.lane.b32.xlu0 %v643, 104
        %v1154 = vpop.permute.xlu0 %1153
        %1155 = vrot.lane.b32.xlu0 %v646, 104
        %v1156 = vpop.permute.xlu0 %1155
        %v1157 = vsel %vm648, %v1154, 0
        %v1159 = vsel %vm648, %v1156, 0
        %1161 = vmatprep.subr.mxu0 0.0
        %1162 = vmatpush1.xpose.msra.mxu0 0.0
        %1163 = vmatprep.subr.mxu0 0.0
        %1164 = vmatpush1.xpose.msra.mxu0 0.0
        %1165 = vmatprep.subr.mxu0 0.0
        %1166 = vmatpush1.xpose.msra.mxu0 0.0
        %1167 = vmatprep.subr.mxu0 0.0
        %1168 = vmatpush1.xpose.msra.mxu0 0.0
        %1169 = vmatprep.subr.mxu0 0.0
        %1170 = vmatpush1.xpose.msra.mxu0 0.0
        %1171 = vmatprep.subr.mxu0 0.0
        %1172 = vmatpush1.xpose.msra.mxu0 0.0
        %1173 = vmatprep.subr.mxu0 0.0
        %1174 = vmatpush1.xpose.msra.mxu0 0.0
        %1175 = vmatprep.subr.mxu0 0.0
        %1176 = vmatpush1.xpose.msra.mxu0 0.0
        %1177 = vmatprep.subr.mxu0 0.0
        %1178 = vmatpush1.xpose.msra.mxu0 0.0
        %1179 = vmatprep.subr.mxu0 0.0
        %1180 = vmatpush1.xpose.msra.mxu0 0.0
        %1181 = vmatprep.subr.mxu0 0.0
        %1182 = vmatpush1.xpose.msra.mxu0 0.0
        %1183 = vmatprep.subr.mxu0 0.0
        %1184 = vmatpush1.xpose.msra.mxu0 0.0
        %1185 = vmatprep.subr.mxu0 0.0
        %1186 = vmatpush1.xpose.msra.mxu0 0.0
        %1187 = vmatprep.subr.mxu0 0.0
        %1188 = vmatpush1.xpose.msra.mxu0 0.0
        %1189 = vmatprep.subr.mxu0 0.0
        %1190 = vmatpush1.xpose.msra.mxu0 0.0
        %1191 = vmatprep.subr.mxu0 0.0
        %1192 = vmatpush1.xpose.msra.mxu0 %v1159
        %1193 = vmatprep.subr.mxu0 0.0
        %1194 = vmatpush2.xpose.msra.mxu0 0.0
        %1195 = vmatprep.subr.mxu0 0.0
        %1196 = vmatpush2.xpose.msra.mxu0 0.0
        %1197 = vmatprep.subr.mxu0 0.0
        %1198 = vmatpush2.xpose.msra.mxu0 0.0
        %1199 = vmatprep.subr.mxu0 0.0
        %1200 = vmatpush2.xpose.msra.mxu0 0.0
        %1201 = vmatprep.subr.mxu0 0.0
        %1202 = vmatpush2.xpose.msra.mxu0 0.0
        %1203 = vmatprep.subr.mxu0 0.0
        %1204 = vmatpush2.xpose.msra.mxu0 0.0
        %1205 = vmatprep.subr.mxu0 0.0
        %1206 = vmatpush2.xpose.msra.mxu0 0.0
        %1207 = vmatprep.subr.mxu0 0.0
        %1208 = vmatpush2.xpose.msra.mxu0 0.0
        %1209 = vmatprep.subr.mxu0 0.0
        %1210 = vmatpush2.xpose.msra.mxu0 0.0
        %1211 = vmatprep.subr.mxu0 0.0
        %1212 = vmatpush2.xpose.msra.mxu0 0.0
        %1213 = vmatprep.subr.mxu0 0.0
        %1214 = vmatpush2.xpose.msra.mxu0 0.0
        %1215 = vmatprep.subr.mxu0 0.0
        %1216 = vmatpush2.xpose.msra.mxu0 0.0
        %1217 = vmatprep.subr.mxu0 0.0
        %1218 = vmatpush2.xpose.msra.mxu0 0.0
        %1219 = vmatprep.subr.mxu0 0.0
        %1220 = vmatpush2.xpose.msra.mxu0 0.0
        %1221 = vmatprep.subr.mxu0 0.0
        %1222 = vmatpush2.xpose.msra.mxu0 0.0
        %1223 = vmatprep.subr.mxu0 0.0
        %1224 = vmatpush2.xpose.msra.mxu0 0.0
        %1225 = vmatprep.mubr.f32.mxu0 0.0
        %1226 = vmatmul.mubr.f32.gmra.mxu0 %v1157
        %v1227 = vpop.f32.mrf.mxu0
        %v1228 = vadd.f32 0.0, %v1227
        %v1229 = vpop.f32.mrf.mxu0
        %1230 = vdwg.mxu0
        %v1231 = vsel %vm648, %v1228, -inf
        %1232 = vmax.xlane.f32.xlu0 %v1231
        %v1233 = vpop.xlane.xlu0 %1232
        %v1234 = vsub.f32 %v1228, %v1233
        %v1235 = vmul.f32 %v1234, 1.442695
        %v1236 = vpow.pop %v1235
        %1237 = vrot.lane.b32.xlu0 %v647, 104
        %v1238 = vpop.permute.xlu0 %1237
        %v1241 = vsel %vm648, %v1236, 0
        %1243 = vmatprep.subr.mxu0 0.0
        %1244 = vmatpush1.msra.mxu0 0.0
        %1245 = vmatprep.subr.mxu0 0.0
        %1246 = vmatpush1.msra.mxu0 0.0
        %1247 = vmatprep.subr.mxu0 0.0
        %1248 = vmatpush1.msra.mxu0 0.0
        %1249 = vmatprep.subr.mxu0 0.0
        %1250 = vmatpush1.msra.mxu0 0.0
        %1251 = vmatprep.subr.mxu0 0.0
        %1252 = vmatpush1.msra.mxu0 0.0
        %1253 = vmatprep.subr.mxu0 0.0
        %1254 = vmatpush1.msra.mxu0 0.0
        %1255 = vmatprep.subr.mxu0 0.0
        %1256 = vmatpush1.msra.mxu0 0.0
        %1257 = vmatprep.subr.mxu0 0.0
        %1258 = vmatpush1.msra.mxu0 0.0
        %1259 = vmatprep.subr.mxu0 0.0
        %1260 = vmatpush1.msra.mxu0 0.0
        %1261 = vmatprep.subr.mxu0 0.0
        %1262 = vmatpush1.msra.mxu0 0.0
        %1263 = vmatprep.subr.mxu0 0.0
        %1264 = vmatpush1.msra.mxu0 0.0
        %1265 = vmatprep.subr.mxu0 0.0
        %1266 = vmatpush1.msra.mxu0 0.0
        %1267 = vmatprep.subr.mxu0 0.0
        %1268 = vmatpush1.msra.mxu0 0.0
        %1269 = vmatprep.subr.mxu0 0.0
        %1270 = vmatpush1.msra.mxu0 0.0
        %1271 = vmatprep.subr.mxu0 0.0
        %1272 = vmatpush1.msra.mxu0 0.0
        %1273 = vmatprep.subr.mxu0 0.0
        %1274 = vmatpush1.msra.mxu0 %v1238
        %1275 = vmatprep.subr.mxu0 0.0
        %1276 = vmatpush2.msra.mxu0 0.0
        %1277 = vmatprep.subr.mxu0 0.0
        %1278 = vmatpush2.msra.mxu0 0.0
        %1279 = vmatprep.subr.mxu0 0.0
        %1280 = vmatpush2.msra.mxu0 0.0
        %1281 = vmatprep.subr.mxu0 0.0
        %1282 = vmatpush2.msra.mxu0 0.0
        %1283 = vmatprep.subr.mxu0 0.0
        %1284 = vmatpush2.msra.mxu0 0.0
        %1285 = vmatprep.subr.mxu0 0.0
        %1286 = vmatpush2.msra.mxu0 0.0
        %1287 = vmatprep.subr.mxu0 0.0
        %1288 = vmatpush2.msra.mxu0 0.0
        %1289 = vmatprep.subr.mxu0 0.0
        %1290 = vmatpush2.msra.mxu0 0.0
        %1291 = vmatprep.subr.mxu0 0.0
        %1292 = vmatpush2.msra.mxu0 0.0
        %1293 = vmatprep.subr.mxu0 0.0
        %1294 = vmatpush2.msra.mxu0 0.0
        %1295 = vmatprep.subr.mxu0 0.0
        %1296 = vmatpush2.msra.mxu0 0.0
        %1297 = vmatprep.subr.mxu0 0.0
        %1298 = vmatpush2.msra.mxu0 0.0
        %1299 = vmatprep.subr.mxu0 0.0
        %1300 = vmatpush2.msra.mxu0 0.0
        %1301 = vmatprep.subr.mxu0 0.0
        %1302 = vmatpush2.msra.mxu0 0.0
        %1303 = vmatprep.subr.mxu0 0.0
        %1304 = vmatpush2.msra.mxu0 0.0
        %1305 = vmatprep.subr.mxu0 0.0
        %1306 = vmatpush2.msra.mxu0 0.0
        %1307 = vmatprep.mubr.f32.mxu0 0.0
        %1308 = vmatmul.mubr.f32.gmra.mxu0 %v1241
        %v1309 = vpop.f32.mrf.mxu0
        %v1310 = vadd.f32 0.0, %v1309
        %v1311 = vpop.f32.mrf.mxu0
        %1312 = vdwg.mxu0
        %v1313 = vsel %vm648, %v1236, 0.0
        %1314 = vadd.xlane.f32.xlu0 %v1313
        %v1315 = vpop.xlane.xlu0 %1314
        %v1316 = vrcp.pop %v1315
        %v1317 = vmul.f32 %v1310, %v1316
        %1319 = vrot.lane.b32.xlu0 %v1317, 24
        %v1320 = vpop.permute.xlu0 %1319
        %vm1322 = vcmask 261312
        %1323 = vst.msk [vmem:[#allocation4] sm:$0xff] %vm1322, %v1320
        %v1324 = vld [vmem:[#allocation4] sm:$0xff]
        %v1325 = vld [vmem:[#allocation13] sm:$0xff]
        %v1326 = vld [vmem:[#allocation13 + $0x8] sm:$0xff]
        %v1327 = vld [vmem:[#allocation13 + $0x10] sm:$0xff]
        %v1328 = vld [vmem:[#allocation13 + $0x18] sm:$0xff]
        %v1329 = vld [vmem:[%s6] sm:$0x1]
        %v1331 = vlaneseq
        %v1332 = vshrl.u32 %v1331, 7
        %v1333 = vsub.s32 0, %v1332
        %v1334 = vrot.slane %v1329, %v1333
        %v1337 = vsel %vm572, %v1324, 0
        %1339 = vmatprep.subr.mxu0 0.0
        %1340 = vmatpush1.msra.mxu0 0.0
        %1341 = vmatprep.subr.mxu0 0.0
        %1342 = vmatpush1.msra.mxu0 0.0
        %1343 = vmatprep.subr.mxu0 0.0
        %1344 = vmatpush1.msra.mxu0 0.0
        %1345 = vmatprep.subr.mxu0 0.0
        %1346 = vmatpush1.msra.mxu0 0.0
        %1347 = vmatprep.subr.mxu0 0.0
        %1348 = vmatpush1.msra.mxu0 0.0
        %1349 = vmatprep.subr.mxu0 0.0
        %1350 = vmatpush1.msra.mxu0 0.0
        %1351 = vmatprep.subr.mxu0 0.0
        %1352 = vmatpush1.msra.mxu0 0.0
        %1353 = vmatprep.subr.mxu0 0.0
        %1354 = vmatpush1.msra.mxu0 0.0
        %1355 = vmatprep.subr.mxu0 0.0
        %1356 = vmatpush1.msra.mxu0 0.0
        %1357 = vmatprep.subr.mxu0 0.0
        %1358 = vmatpush1.msra.mxu0 0.0
        %1359 = vmatprep.subr.mxu0 0.0
        %1360 = vmatpush1.msra.mxu0 0.0
        %1361 = vmatprep.subr.mxu0 0.0
        %1362 = vmatpush1.msra.mxu0 0.0
        %1363 = vmatprep.subr.mxu0 0.0
        %1364 = vmatpush1.msra.mxu0 %v1328
        %1365 = vmatprep.subr.mxu0 0.0
        %1366 = vmatpush1.msra.mxu0 %v1327
        %1367 = vmatprep.subr.mxu0 0.0
        %1368 = vmatpush1.msra.mxu0 %v1326
        %1369 = vmatprep.subr.mxu0 0.0
        %1370 = vmatpush1.msra.mxu0 %v1325
        %1371 = vmatprep.subr.mxu0 0.0
        %1372 = vmatpush2.msra.mxu0 0.0
        %1373 = vmatprep.subr.mxu0 0.0
        %1374 = vmatpush2.msra.mxu0 0.0
        %1375 = vmatprep.subr.mxu0 0.0
        %1376 = vmatpush2.msra.mxu0 0.0
        %1377 = vmatprep.subr.mxu0 0.0
        %1378 = vmatpush2.msra.mxu0 0.0
        %1379 = vmatprep.subr.mxu0 0.0
        %1380 = vmatpush2.msra.mxu0 0.0
        %1381 = vmatprep.subr.mxu0 0.0
        %1382 = vmatpush2.msra.mxu0 0.0
        %1383 = vmatprep.subr.mxu0 0.0
        %1384 = vmatpush2.msra.mxu0 0.0
        %1385 = vmatprep.subr.mxu0 0.0
        %1386 = vmatpush2.msra.mxu0 0.0
        %1387 = vmatprep.subr.mxu0 0.0
        %1388 = vmatpush2.msra.mxu0 0.0
        %1389 = vmatprep.subr.mxu0 0.0
        %1390 = vmatpush2.msra.mxu0 0.0
        %1391 = vmatprep.subr.mxu0 0.0
        %1392 = vmatpush2.msra.mxu0 0.0
        %1393 = vmatprep.subr.mxu0 0.0
        %1394 = vmatpush2.msra.mxu0 0.0
        %1395 = vmatprep.subr.mxu0 0.0
        %1396 = vmatpush2.msra.mxu0 0.0
        %1397 = vmatprep.subr.mxu0 0.0
        %1398 = vmatpush2.msra.mxu0 0.0
        %1399 = vmatprep.subr.mxu0 0.0
        %1400 = vmatpush2.msra.mxu0 0.0
        %1401 = vmatprep.subr.mxu0 0.0
        %1402 = vmatpush2.msra.mxu0 0.0
        %1403 = vmatprep.mubr.f32.mxu0 0.0
        %1404 = vmatmul.mubr.f32.gmra.mxu0 %v1337
        %v1405 = vpop.f32.mrf.mxu0
        %v1406 = vadd.f32 %v1334, %v1405
        %v1407 = vpop.f32.mrf.mxu0
        %1408 = vdwg.mxu0
        %1409 = vst.msk [vmem:[%s378] sm:$0xff] %vm572, %v1406
        %s1410 = sand.u32 %s212, 1
        %s1411 = scalar_lea.sflag [#allocation7], %s1410
        %s1412 = sand.u32 %s212, 1
        %s1413 = smul.addr %s1412, 8
        %s1414 = scalar_lea.vmem [#allocation14], %s1413
        // Predicated region
        $region73: #{tpu_custom_call.1} parent=47 // pred_check
          %p1415 = pneg %p222
        $region74: #{tpu_custom_call.1} parent=47 // pred_check_branch
          %1417 = sbr.rel (%p1415) target = $region76
        $region75: #{tpu_custom_call.1} parent=47 // pred_region
          %s1419 = ssub.s32 128, 128
          %1420 = vsyncadd %s1411, %s1419
          %s1421 = sadd.s32 %s31, %s30
          %s1422 = smul.addr %s1421, 128
          %s1423 = scalar_lea.hbm %s7, %s1422
          %s1425 = sshll.u32 %s1414, 4
          %s1426 = int_to_ptr.vmem [resolvable:$true] %s1425
          %1428 = dma.vmem_to_hbm [thread:$0]  %s1426, 128, %s1423, %s1411
        $region76: #{tpu_custom_call.1} parent=47 // pred_fallthru
          _
      $region48: #{tpu_custom_call.1} parent=5 // pred_fallthru
        _
      %p1429 = scmp.le.s32.totalorder 2, %s21
      // Predicated region
      $region77: #{tpu_custom_call.1} parent=5 // pred_check
        %p1430 = pneg %p1429
      $region78: #{tpu_custom_call.1} parent=5 // pred_check_branch
        %1432 = sbr.rel (%p1430) target = $region80
      $region79: #{tpu_custom_call.1} parent=5 // pred_region
        %s1433 = ssub.s32 %s21, 2
        // Predicated region
        $region81: #{tpu_custom_call.1} parent=79 // pred_check
          %p1434 = pneg %p228
        $region82: #{tpu_custom_call.1} parent=79 // pred_check_branch
          %1436 = sbr.rel (%p1434) target = $region84
        $region83: #{tpu_custom_call.1} parent=79 // pred_region
          %s1437 = sand.u32 %s213, 1
          %s1438 = scalar_lea.sflag [#allocation7], %s1437
          %s1439 = sand.u32 %s213, 1
          %s1440 = smul.addr %s1439, 8
          %s1441 = scalar_lea.vmem [#allocation14], %s1440
          %1442 = dma.done %s1438, 128
        $region84: #{tpu_custom_call.1} parent=79 // pred_fallthru
          _
      $region80: #{tpu_custom_call.1} parent=5 // pred_fallthru
        _
    $region6: #{tpu_custom_call.1} parent=1 // loop_footer
      %s25 = sadd.s32 1, %s21
    $region7: #{tpu_custom_call.1} parent=1 // loop_footer_branch
      %20 = sbr.rel target = $region3
    $region8: #{tpu_custom_call.1} parent=1 // loop_exit
      _
    %1443 = vsyncpa [#allocation6], 1
    %s1444 = scalar_lea.sflag [#allocation6], 1
    %1445 = vsyncpa %s1444, 1
    %1446 = vsyncpa [#allocation9], 1
    %1447 = vsyncpa [#allocation12], 1
    %1448 = vsyncpa [#allocation7], 1
    %s1449 = scalar_lea.sflag [#allocation7], 1
    %1450 = vsyncpa %s1449, 1

</llo_original>
